<compile_context>
chip_gen: v7x
topology: tpu7x:2x2x1
jax: 0.10.0
libtpu: 0.0.40
codegen_flags: <defaults>
</compile_context>

<pallas_src>
import functools

import jax
import jax.numpy as jnp
from jax.experimental import pallas as pl
from jax.experimental.pallas import tpu as pltpu

EPS = 1e-5
LANE = 128
TILE_M = 128      # node-row tile (output sublane axis)
TILE_K = 128      # Â-column (reduction) tile; raise for large graphs if VMEM allows


# --------------------------------------------------------------------------- #
# small helpers
# --------------------------------------------------------------------------- #
def _round_up(v, m):
    return (v + m - 1) // m * m


def _pad2(a, rows, cols):
    return jnp.zeros((rows, cols), a.dtype).at[: a.shape[0], : a.shape[1]].set(a)


def _pad1(v, cols):
    return jnp.zeros((cols,), v.dtype).at[: v.shape[0]].set(v)


def _pack_rows(cols, scale, shift, bias):
    """Pack per-channel params into one lane-dense [8, C] array (single DMA)."""
    prm = jnp.zeros((8, cols), jnp.float32)
    prm = prm.at[0].set(scale)
    prm = prm.at[1].set(shift)
    prm = prm.at[2].set(bias)
    return prm


# --------------------------------------------------------------------------- #
# kernels
# --------------------------------------------------------------------------- #
def _gcn_conv_kernel(a_ref, xin_ref, prm_ref, w_ref, h_ref, st_ref, acc_ref,
                     *, normalize_input):
    """One (row-tile i, Â-column-tile k) step of  out = (Â @ f(xin)) @ W + b.

    f(xin) = relu(scale * xin + shift) when normalize_input (fused GraphNorm+ReLU
    of the previous layer, requires Cin == Cout), else identity.
    Also emits per-row-tile channel sums / sums-of-squares for the next GraphNorm.
    prm rows: 0 = scale, 1 = shift, 2 = post-matmul bias.
    """
    k = pl.program_id(1)

    @pl.when(k == 0)
    def _init():
        acc_ref[...] = jnp.zeros_like(acc_ref)

    xk = xin_ref[...]                                            # [TILE_K, Cin] bf16
    if normalize_input:
        xf = prm_ref[0:1, :] * xk.astype(jnp.float32) + prm_ref[1:2, :]
        xk = jnp.maximum(xf, 0.0).astype(jnp.bfloat16)

    # bf16 x bf16 -> f32 accumulate on the MXU.
    acc_ref[...] += jnp.dot(a_ref[...], xk, preferred_element_type=jnp.float32)

    @pl.when(k == pl.num_programs(1) - 1)
    def _finalize():
        h = jnp.dot(acc_ref[...], w_ref[...], preferred_element_type=jnp.float32)
        h = h + prm_ref[2:3, :]
        h_ref[...] = h.astype(h_ref.dtype)
        s1 = jnp.sum(h, axis=0, keepdims=True)
        s2 = jnp.sum(h * h, axis=0, keepdims=True)
        st_ref[0] = jnp.concatenate(
            [s1, s2, jnp.zeros((6, h.shape[1]), jnp.float32)], axis=0)


def _epilogue_kernel(h2_ref, x_ref, prm_ref, wr_ref, out_ref):
    """out = relu(GraphNorm2(h2) + x @ Wr + br), one node-row tile per step."""
    res = jnp.dot(x_ref[...], wr_ref[...], preferred_element_type=jnp.float32)
    h = prm_ref[0:1, :] * h2_ref[...] + prm_ref[1:2, :]
    out_ref[...] = jnp.maximum(h + res + prm_ref[2:3, :], 0.0)


# --------------------------------------------------------------------------- #
# pallas_call wrappers
# --------------------------------------------------------------------------- #
def _fused_gcn_conv(a_hat, xin, w, prm, *, normalize_input, out_dtype):
    n_p = a_hat.shape[0]
    cin = xin.shape[1]
    cout = w.shape[1]
    nrt = n_p // TILE_M
    nkt = n_p // TILE_K

    kernel = functools.partial(_gcn_conv_kernel, normalize_input=normalize_input)
    return pl.pallas_call(
        kernel,
        out_shape=(
            jax.ShapeDtypeStruct((n_p, cout), out_dtype),        # conv output
            jax.ShapeDtypeStruct((nrt, 8, cout), jnp.float32),   # per-tile stats
        ),
        grid_spec=pltpu.PrefetchScalarGridSpec(
            num_scalar_prefetch=0,
            grid=(nrt, nkt),
            in_specs=[
                pl.BlockSpec((TILE_M, TILE_K), lambda i, k: (i, k)),  # Â tile
                pl.BlockSpec((TILE_K, cin), lambda i, k: (k, 0)),     # xin tile
                pl.BlockSpec((8, cout), lambda i, k: (0, 0)),         # packed params
                pl.BlockSpec((cin, cout), lambda i, k: (0, 0)),       # weight
            ],
            out_specs=[
                pl.BlockSpec((TILE_M, cout), lambda i, k: (i, 0)),
                pl.BlockSpec((1, 8, cout), lambda i, k: (i, 0, 0)),
            ],
            scratch_shapes=[pltpu.VMEM((TILE_M, cin), jnp.float32)],
        ),
        compiler_params=pltpu.CompilerParams(
            dimension_semantics=("parallel", "arbitrary"),
            vmem_limit_bytes=32 * 1024 * 1024,
        ),
    )(a_hat, xin, prm, w)


def _epilogue(h2, x_f32, prm, wr):
    n_p, cout = h2.shape
    cin = x_f32.shape[1]
    nrt = n_p // TILE_M
    return pl.pallas_call(
        _epilogue_kernel,
        out_shape=jax.ShapeDtypeStruct((n_p, cout), jnp.float32),
        grid_spec=pltpu.PrefetchScalarGridSpec(
            num_scalar_prefetch=0,
            grid=(nrt,),
            in_specs=[
                pl.BlockSpec((TILE_M, cout), lambda i: (i, 0)),
                pl.BlockSpec((TILE_M, cin), lambda i: (i, 0)),
                pl.BlockSpec((8, cout), lambda i: (0, 0)),
                pl.BlockSpec((cin, cout), lambda i: (0, 0)),
            ],
            out_specs=pl.BlockSpec((TILE_M, cout), lambda i: (i, 0)),
        ),
        compiler_params=pltpu.CompilerParams(
            dimension_semantics=("parallel",),
            vmem_limit_bytes=32 * 1024 * 1024,
        ),
    )(h2, x_f32, prm, wr)


# --------------------------------------------------------------------------- #
# plain-JAX glue
# --------------------------------------------------------------------------- #
def build_normalized_adjacency(edge_index, num_nodes):
    """Dense GCN adjacency D^-1/2 (A + remaining self-loops) D^-1/2 (PyG gcn_norm).

    Duplicate edges count multiply; existing self-loops are kept (not doubled).
    """
    src = edge_index[0]
    dst = edge_index[1]
    a = jnp.zeros((num_nodes, num_nodes), jnp.float32)
    a = a.at[dst, src].add(1.0)
    diag = jnp.diagonal(a)
    a = a + jnp.diag(jnp.where(diag > 0.0, 0.0, 1.0))   # add_remaining_self_loops
    deg = jnp.sum(a, axis=1)
    d_inv_sqrt = jnp.where(deg > 0.0, jax.lax.rsqrt(deg), 0.0)
    return d_inv_sqrt[:, None] * a * d_inv_sqrt[None, :]


def _graphnorm_affine(stats, bias, gamma, beta, alpha, n_real, n_pad):
    """Combine per-row-tile (sum, sumsq) into GraphNorm scale/shift per channel.

    Padded (all-zero) rows of Â contribute exactly `bias` to the conv output,
    so their contribution is subtracted exactly. O(C) vector math (glue).
    """
    s1 = jnp.sum(stats[:, 0, :], axis=0) - n_pad * bias
    s2 = jnp.sum(stats[:, 1, :], axis=0) - n_pad * bias * bias
    mu = s1 / n_real
    msq = s2 / n_real
    var = msq - 2.0 * alpha * mu * mu + (alpha * mu) ** 2
    inv = jax.lax.rsqrt(var + EPS)
    scale = gamma * inv
    shift = beta - scale * alpha * mu
    return scale, shift


def residual_block(x, edge_index, params):
    n, c_in = x.shape
    c_hid = params["w1"].shape[1]

    n_p = _round_up(n, max(TILE_M, TILE_K))
    cin_p = _round_up(c_in, LANE)
    cp = _round_up(c_hid, LANE)
    n_pad = n_p - n

    # graph preprocessing glue: dense normalized adjacency, padded + bf16
    a_hat = build_normalized_adjacency(edge_index, n)
    a_hat = _pad2(a_hat, n_p, n_p).astype(jnp.bfloat16)

    x_f32 = _pad2(x.astype(jnp.float32), n_p, cin_p)
    x_bf16 = x_f32.astype(jnp.bfloat16)

    # lane-dense (128-multiple) zero-padded parameters
    w1 = _pad2(params["w1"].astype(jnp.float32), cin_p, cp)
    w2 = _pad2(params["w2"].astype(jnp.float32), cp, cp)
    wr = _pad2(params["wr"].astype(jnp.float32), cin_p, cp)
    b1 = _pad1(params["b1"].astype(jnp.float32), cp)
    b2 = _pad1(params["b2"].astype(jnp.float32), cp)
    br = _pad1(params["br"].astype(jnp.float32), cp)
    g1 = _pad1(params["g1"].astype(jnp.float32), cp)
    be1 = _pad1(params["be1"].astype(jnp.float32), cp)
    al1 = _pad1(params["al1"].astype(jnp.float32), cp)
    g2 = _pad1(params["g2"].astype(jnp.float32), cp)
    be2 = _pad1(params["be2"].astype(jnp.float32), cp)
    al2 = _pad1(params["al2"].astype(jnp.float32), cp)

    ones = jnp.ones((cp,), jnp.float32)
    zeros = jnp.zeros((cp,), jnp.float32)

    # conv1: h1 = (Â @ x) @ W1 + b1   (+ channel stats for GraphNorm1)
    prm1 = _pack_rows(cp, ones, zeros, b1)
    h1, st1 = _fused_gcn_conv(a_hat, x_bf16, w1, prm1,
                              normalize_input=False, out_dtype=jnp.bfloat16)
    scale1, shift1 = _graphnorm_affine(st1, b1, g1, be1, al1,
                                       float(n), float(n_pad))

    # conv2: h2 = (Â @ relu(GraphNorm1(h1))) @ W2 + b2   (norm+relu fused on load)
    prm2 = _pack_rows(cp, scale1, shift1, b2)
    h2, st2 = _fused_gcn_conv(a_hat, h1, w2, prm2,
                              normalize_input=True, out_dtype=jnp.float32)
    scale2, shift2 = _graphnorm_affine(st2, b2, g2, be2, al2,
                                       float(n), float(n_pad))

    # epilogue: relu(GraphNorm2(h2) + x @ Wr + br)
    prm_ep = _pack_rows(cp, scale2, shift2, br)
    out = _epilogue(h2, x_f32, prm_ep, wr)
    return out[:n, :c_hid]


# --------------------------------------------------------------------------- #
# parameters + demo
# --------------------------------------------------------------------------- #
def init_params(key, in_channels, hidden_channels):
    ks = jax.random.split(key, 4)
    s_in = 1.0 / jnp.sqrt(in_channels)
    s_hid = 1.0 / jnp.sqrt(hidden_channels)
    return {
        # GCNConv 1
        "w1": jax.random.uniform(ks[0], (in_channels, hidden_channels),
                                 jnp.float32, -s_in, s_in),
        "b1": jnp.zeros((hidden_channels,), jnp.float32),
        # GraphNorm 1 (weight=1, bias=0, mean_scale=1 — PyG defaults)
        "g1": jnp.ones((hidden_channels,), jnp.float32),
        "be1": jnp.zeros((hidden_channels,), jnp.float32),
        "al1": jnp.ones((hidden_channels,), jnp.float32),
        # GCNConv 2
        "w2": jax.random.uniform(ks[1], (hidden_channels, hidden_channels),
                                 jnp.float32, -s_hid, s_hid),
        "b2": jnp.zeros((hidden_channels,), jnp.float32),
        # GraphNorm 2
        "g2": jnp.ones((hidden_channels,), jnp.float32),
        "be2": jnp.zeros((hidden_channels,), jnp.float32),
        "al2": jnp.ones((hidden_channels,), jnp.float32),
        # residual Linear (in_channels != hidden_channels branch)
        "wr": jax.random.uniform(ks[2], (in_channels, hidden_channels),
                                 jnp.float32, -s_in, s_in),
        "br": jax.random.uniform(ks[3], (hidden_channels,),
                                 jnp.float32, -s_in, s_in),
    }


if __name__ == "__main__":
    N, C_IN, C_HID, E = 64, 16, 32, 256

    key = jax.random.PRNGKey(0)
    k_x, k_e, k_p = jax.random.split(key, 3)

    x = jax.random.normal(k_x, (N, C_IN), jnp.float32)
    ends = jax.random.randint(k_e, (2, E // 2), 0, N)
    edge_index = jnp.concatenate([ends, ends[::-1]], axis=1)   # undirected [2, E]

    params = init_params(k_p, C_IN, C_HID)

    fwd = jax.jit(residual_block)
    out = jax.block_until_ready(fwd(x, edge_index, params))

    assert out.shape == (N, C_HID)
    assert bool(jnp.all(jnp.isfinite(out)))
    assert bool(jnp.all(out >= 0.0))   # final ReLU
    print("KERNEL_OK")
</pallas_src>

<mosaic_0001>
module attributes {stable_mosaic.version = 11 : i64} {
  func.func private @main(%arg0: i32) attributes {dimension_semantics = [#tpu.dimension_semantics<core_parallel>], iteration_bounds = array<i64: 2>, tpu.core_type = #tpu.core_type<sc_scalar_subcore>, window_params = []} {
    return
  }
}

module attributes {stable_mosaic.version = 11 : i64} {
  func.func private @main(%arg0: i32) attributes {dimension_semantics = [#tpu.dimension_semantics<core_parallel>], iteration_bounds = array<i64: 2>, tpu.core_type = #tpu.core_type<sc_scalar_subcore>, window_params = []} {
    return
  }
}

module attributes {stable_mosaic.version = 11 : i64} {
  func.func @_gcn_conv_kernel(%arg0: i32, %arg1: i32, %arg2: memref<128x128xbf16, #tpu.memory_space<vmem>>, %arg3: memref<128x128xbf16, #tpu.memory_space<vmem>>, %arg4: memref<8x128xf32, #tpu.memory_space<vmem>>, %arg5: memref<128x128xf32, #tpu.memory_space<vmem>>, %arg6: memref<128x128xbf16, #tpu.memory_space<vmem>>, %arg7: memref<1x8x128xf32, #tpu.memory_space<vmem>>, %arg8: memref<128x128xf32, #tpu.memory_space<vmem>>) attributes {dimension_semantics = [#tpu.dimension_semantics<parallel>, #tpu.dimension_semantics<arbitrary>], iteration_bounds = array<i64: 1, 1>, scalar_prefetch = 0 : i64, scratch_operands = 1 : i64, tpu.core_type = #tpu.core_type<tc>, window_params = [{transform_indices = @transform_0, window_bounds = array<i64: 128, 128>}, {transform_indices = @transform_1, window_bounds = array<i64: 128, 128>}, {pipeline_mode = #tpu.pipeline_mode<synchronous>, transform_indices = @transform_2, window_bounds = array<i64: 8, 128>}, {pipeline_mode = #tpu.pipeline_mode<synchronous>, transform_indices = @transform_3, window_bounds = array<i64: 128, 128>}, {transform_indices = @transform_4, window_bounds = array<i64: 128, 128>}, {transform_indices = @transform_5, window_bounds = array<i64: 1, 8, 128>}]} {
    %c0_i32 = arith.constant 0 : i32
    %0 = arith.cmpi eq, %arg1, %c0_i32 : i32
    %1 = arith.extui %0 : i1 to i32
    %c0_i32_0 = arith.constant 0 : i32
    %2 = arith.cmpi ne, %1, %c0_i32_0 : i32
    scf.if %2 {
      %cst_10 = arith.constant 0.000000e+00 : f32
      %12 = vector.broadcast %cst_10 : f32 to vector<128x128xf32>
      %c0_11 = arith.constant 0 : index
      %c0_12 = arith.constant 0 : index
      %13 = vector.load %arg8[%c0_11, %c0_12] : memref<128x128xf32, #tpu.memory_space<vmem>>, vector<128x128xf32>
      tpu.vector_store %arg8[%c0_11, %c0_12], %12 {strides = array<i32>} : memref<128x128xf32, #tpu.memory_space<vmem>>, vector<128x128xf32>,
    } else {
    }
    %c0 = arith.constant 0 : index
    %c0_1 = arith.constant 0 : index
    %3 = vector.load %arg3[%c0, %c0_1] : memref<128x128xbf16, #tpu.memory_space<vmem>>, vector<128x128xbf16>
    %c0_2 = arith.constant 0 : index
    %c0_3 = arith.constant 0 : index
    %4 = vector.load %arg8[%c0_2, %c0_3] : memref<128x128xf32, #tpu.memory_space<vmem>>, vector<128x128xf32>
    %c0_4 = arith.constant 0 : index
    %c0_5 = arith.constant 0 : index
    %5 = vector.load %arg2[%c0_4, %c0_5] : memref<128x128xbf16, #tpu.memory_space<vmem>>, vector<128x128xbf16>
    %cst = arith.constant dense<0.000000e+00> : vector<128x128xf32>
    %6 = tpu.matmul %5, %3, %cst {dimension_numbers = #tpu.dot_dimension_numbers<[1], [0], [0], [1], [0, 0, 1, 1], [], []>} : vector<128x128xbf16>, vector<128x128xbf16>, vector<128x128xf32> -> vector<128x128xf32>
    %7 = arith.addf %4, %6 : vector<128x128xf32>
    %c0_6 = arith.constant 0 : index
    %c0_7 = arith.constant 0 : index
    %8 = vector.load %arg8[%c0_6, %c0_7] : memref<128x128xf32, #tpu.memory_space<vmem>>, vector<128x128xf32>
    tpu.vector_store %arg8[%c0_6, %c0_7], %7 {strides = array<i32>} : memref<128x128xf32, #tpu.memory_space<vmem>>, vector<128x128xf32>,
    %c0_i32_8 = arith.constant 0 : i32
    %9 = arith.cmpi eq, %arg1, %c0_i32_8 : i32
    %10 = arith.extui %9 : i1 to i32
    %c0_i32_9 = arith.constant 0 : i32
    %11 = arith.cmpi ne, %10, %c0_i32_9 : i32
    scf.if %11 {
      %c0_10 = arith.constant 0 : index
      %c0_11 = arith.constant 0 : index
      %12 = vector.load %arg8[%c0_10, %c0_11] : memref<128x128xf32, #tpu.memory_space<vmem>>, vector<128x128xf32>
      %c0_12 = arith.constant 0 : index
      %c0_13 = arith.constant 0 : index
      %13 = vector.load %arg5[%c0_12, %c0_13] : memref<128x128xf32, #tpu.memory_space<vmem>>, vector<128x128xf32>
      %cst_14 = arith.constant dense<0.000000e+00> : vector<128x128xf32>
      %14 = tpu.matmul %12, %13, %cst_14 {dimension_numbers = #tpu.dot_dimension_numbers<[1], [0], [0], [1], [0, 0, 1, 1], [], []>} : vector<128x128xf32>, vector<128x128xf32>, vector<128x128xf32> -> vector<128x128xf32>
      %c2 = arith.constant 2 : index
      %c0_15 = arith.constant 0 : index
      %15 = vector.load %arg4[%c2, %c0_15] : memref<8x128xf32, #tpu.memory_space<vmem>>, vector<1x128xf32>
      %16 = vector.broadcast %15 : vector<1x128xf32> to vector<128x128xf32>
      %17 = arith.addf %14, %16 : vector<128x128xf32>
      %18 = arith.truncf %17 : vector<128x128xf32> to vector<128x128xbf16>
      %c0_16 = arith.constant 0 : index
      %c0_17 = arith.constant 0 : index
      %19 = vector.load %arg6[%c0_16, %c0_17] : memref<128x128xbf16, #tpu.memory_space<vmem>>, vector<128x128xbf16>
      tpu.vector_store %arg6[%c0_16, %c0_17], %18 {strides = array<i32>} : memref<128x128xbf16, #tpu.memory_space<vmem>>, vector<128x128xbf16>,
      %cst_18 = arith.constant dense<0.000000e+00> : vector<128xf32>
      %20 = vector.multi_reduction <add>, %17, %cst_18 [0] : vector<128x128xf32> to vector<128xf32>
      %21 = vector.shape_cast %20 : vector<128xf32> to vector<1x128xf32>
      %22 = arith.mulf %17, %17 : vector<128x128xf32>
      %cst_19 = arith.constant dense<0.000000e+00> : vector<128xf32>
      %23 = vector.multi_reduction <add>, %22, %cst_19 [0] : vector<128x128xf32> to vector<128xf32>
      %24 = vector.shape_cast %23 : vector<128xf32> to vector<1x128xf32>
      %cst_20 = arith.constant 0.000000e+00 : f32
      %25 = vector.broadcast %cst_20 : f32 to vector<6x128xf32>
      %26 = tpu.concatenate %21, %24, %25 in 0 : vector<1x128xf32>, vector<1x128xf32>, vector<6x128xf32> -> vector<8x128xf32>
      %c0_21 = arith.constant 0 : index
      %c0_22 = arith.constant 0 : index
      %c0_23 = arith.constant 0 : index
      %27 = vector.load %arg7[%c0_21, %c0_22, %c0_23] : memref<1x8x128xf32, #tpu.memory_space<vmem>>, vector<1x8x128xf32>
      %28 = vector.shape_cast %27 : vector<1x8x128xf32> to vector<8x128xf32>
      %29 = vector.shape_cast %26 : vector<8x128xf32> to vector<1x8x128xf32>
      tpu.vector_store %arg7[%c0_21, %c0_22, %c0_23], %29 {strides = array<i32>} : memref<1x8x128xf32, #tpu.memory_space<vmem>>, vector<1x8x128xf32>,
    } else {
    }
    return
  }
  func.func @transform_0(%arg0: i32, %arg1: i32) -> (i32, i32) {
    %c0_i32 = arith.constant 0 : i32
    return %arg0, %arg1 : i32, i32
  }
  func.func @transform_1(%arg0: i32, %arg1: i32) -> (i32, i32) {
    %c0_i32 = arith.constant 0 : i32
    %c0_i32_0 = arith.constant 0 : i32
    return %arg1, %c0_i32 : i32, i32
  }
  func.func @transform_2(%arg0: i32, %arg1: i32) -> (i32, i32) {
    %c0_i32 = arith.constant 0 : i32
    %c0_i32_0 = arith.constant 0 : i32
    %c0_i32_1 = arith.constant 0 : i32
    return %c0_i32, %c0_i32_0 : i32, i32
  }
  func.func @transform_3(%arg0: i32, %arg1: i32) -> (i32, i32) {
    %c0_i32 = arith.constant 0 : i32
    %c0_i32_0 = arith.constant 0 : i32
    %c0_i32_1 = arith.constant 0 : i32
    return %c0_i32, %c0_i32_0 : i32, i32
  }
  func.func @transform_4(%arg0: i32, %arg1: i32) -> (i32, i32) {
    %c0_i32 = arith.constant 0 : i32
    %c0_i32_0 = arith.constant 0 : i32
    return %arg0, %c0_i32 : i32, i32
  }
  func.func @transform_5(%arg0: i32, %arg1: i32) -> (i32, i32, i32) {
    %c0_i32 = arith.constant 0 : i32
    %c0_i32_0 = arith.constant 0 : i32
    %c0_i32_1 = arith.constant 0 : i32
    return %arg0, %c0_i32, %c0_i32_0 : i32, i32, i32
  }
}

module attributes {stable_mosaic.version = 11 : i64} {
  func.func @_gcn_conv_kernel(%arg0: i32, %arg1: i32, %arg2: memref<128x128xbf16, #tpu.memory_space<vmem>>, %arg3: memref<128x128xbf16, #tpu.memory_space<vmem>>, %arg4: memref<8x128xf32, #tpu.memory_space<vmem>>, %arg5: memref<128x128xf32, #tpu.memory_space<vmem>>, %arg6: memref<128x128xf32, #tpu.memory_space<vmem>>, %arg7: memref<1x8x128xf32, #tpu.memory_space<vmem>>, %arg8: memref<128x128xf32, #tpu.memory_space<vmem>>) attributes {dimension_semantics = [#tpu.dimension_semantics<parallel>, #tpu.dimension_semantics<arbitrary>], iteration_bounds = array<i64: 1, 1>, scalar_prefetch = 0 : i64, scratch_operands = 1 : i64, tpu.core_type = #tpu.core_type<tc>, window_params = [{transform_indices = @transform_0, window_bounds = array<i64: 128, 128>}, {transform_indices = @transform_1, window_bounds = array<i64: 128, 128>}, {pipeline_mode = #tpu.pipeline_mode<synchronous>, transform_indices = @transform_2, window_bounds = array<i64: 8, 128>}, {pipeline_mode = #tpu.pipeline_mode<synchronous>, transform_indices = @transform_3, window_bounds = array<i64: 128, 128>}, {transform_indices = @transform_4, window_bounds = array<i64: 128, 128>}, {transform_indices = @transform_5, window_bounds = array<i64: 1, 8, 128>}]} {
    %c0_i32 = arith.constant 0 : i32
    %0 = arith.cmpi eq, %arg1, %c0_i32 : i32
    %1 = arith.extui %0 : i1 to i32
    %c0_i32_0 = arith.constant 0 : i32
    %2 = arith.cmpi ne, %1, %c0_i32_0 : i32
    scf.if %2 {
      %cst_14 = arith.constant 0.000000e+00 : f32
      %22 = vector.broadcast %cst_14 : f32 to vector<128x128xf32>
      %c0_15 = arith.constant 0 : index
      %c0_16 = arith.constant 0 : index
      %23 = vector.load %arg8[%c0_15, %c0_16] : memref<128x128xf32, #tpu.memory_space<vmem>>, vector<128x128xf32>
      tpu.vector_store %arg8[%c0_15, %c0_16], %22 {strides = array<i32>} : memref<128x128xf32, #tpu.memory_space<vmem>>, vector<128x128xf32>,
    } else {
    }
    %c0 = arith.constant 0 : index
    %c0_1 = arith.constant 0 : index
    %3 = vector.load %arg3[%c0, %c0_1] : memref<128x128xbf16, #tpu.memory_space<vmem>>, vector<128x128xbf16>
    %c0_2 = arith.constant 0 : index
    %c0_3 = arith.constant 0 : index
    %4 = vector.load %arg4[%c0_2, %c0_3] : memref<8x128xf32, #tpu.memory_space<vmem>>, vector<1x128xf32>
    %5 = arith.extf %3 : vector<128x128xbf16> to vector<128x128xf32>
    %6 = vector.broadcast %4 : vector<1x128xf32> to vector<128x128xf32>
    %7 = arith.mulf %6, %5 : vector<128x128xf32>
    %c1 = arith.constant 1 : index
    %c0_4 = arith.constant 0 : index
    %8 = vector.load %arg4[%c1, %c0_4] : memref<8x128xf32, #tpu.memory_space<vmem>>, vector<1x128xf32>
    %9 = vector.broadcast %8 : vector<1x128xf32> to vector<128x128xf32>
    %10 = arith.addf %7, %9 : vector<128x128xf32>
    %cst = arith.constant 0.000000e+00 : f32
    %11 = vector.broadcast %cst : f32 to vector<128x128xf32>
    %12 = arith.maximumf %10, %11 : vector<128x128xf32>
    %13 = arith.truncf %12 : vector<128x128xf32> to vector<128x128xbf16>
    %c0_5 = arith.constant 0 : index
    %c0_6 = arith.constant 0 : index
    %14 = vector.load %arg8[%c0_5, %c0_6] : memref<128x128xf32, #tpu.memory_space<vmem>>, vector<128x128xf32>
    %c0_7 = arith.constant 0 : index
    %c0_8 = arith.constant 0 : index
    %15 = vector.load %arg2[%c0_7, %c0_8] : memref<128x128xbf16, #tpu.memory_space<vmem>>, vector<128x128xbf16>
    %cst_9 = arith.constant dense<0.000000e+00> : vector<128x128xf32>
    %16 = tpu.matmul %15, %13, %cst_9 {dimension_numbers = #tpu.dot_dimension_numbers<[1], [0], [0], [1], [0, 0, 1, 1], [], []>} : vector<128x128xbf16>, vector<128x128xbf16>, vector<128x128xf32> -> vector<128x128xf32>
    %17 = arith.addf %14, %16 : vector<128x128xf32>
    %c0_10 = arith.constant 0 : index
    %c0_11 = arith.constant 0 : index
    %18 = vector.load %arg8[%c0_10, %c0_11] : memref<128x128xf32, #tpu.memory_space<vmem>>, vector<128x128xf32>
    tpu.vector_store %arg8[%c0_10, %c0_11], %17 {strides = array<i32>} : memref<128x128xf32, #tpu.memory_space<vmem>>, vector<128x128xf32>,
    %c0_i32_12 = arith.constant 0 : i32
    %19 = arith.cmpi eq, %arg1, %c0_i32_12 : i32
    %20 = arith.extui %19 : i1 to i32
    %c0_i32_13 = arith.constant 0 : i32
    %21 = arith.cmpi ne, %20, %c0_i32_13 : i32
    scf.if %21 {
      %c0_14 = arith.constant 0 : index
      %c0_15 = arith.constant 0 : index
      %22 = vector.load %arg8[%c0_14, %c0_15] : memref<128x128xf32, #tpu.memory_space<vmem>>, vector<128x128xf32>
      %c0_16 = arith.constant 0 : index
      %c0_17 = arith.constant 0 : index
      %23 = vector.load %arg5[%c0_16, %c0_17] : memref<128x128xf32, #tpu.memory_space<vmem>>, vector<128x128xf32>
      %cst_18 = arith.constant dense<0.000000e+00> : vector<128x128xf32>
      %24 = tpu.matmul %22, %23, %cst_18 {dimension_numbers = #tpu.dot_dimension_numbers<[1], [0], [0], [1], [0, 0, 1, 1], [], []>} : vector<128x128xf32>, vector<128x128xf32>, vector<128x128xf32> -> vector<128x128xf32>
      %c2 = arith.constant 2 : index
      %c0_19 = arith.constant 0 : index
      %25 = vector.load %arg4[%c2, %c0_19] : memref<8x128xf32, #tpu.memory_space<vmem>>, vector<1x128xf32>
      %26 = vector.broadcast %25 : vector<1x128xf32> to vector<128x128xf32>
      %27 = arith.addf %24, %26 : vector<128x128xf32>
      %c0_20 = arith.constant 0 : index
      %c0_21 = arith.constant 0 : index
      %28 = vector.load %arg6[%c0_20, %c0_21] : memref<128x128xf32, #tpu.memory_space<vmem>>, vector<128x128xf32>
      tpu.vector_store %arg6[%c0_20, %c0_21], %27 {strides = array<i32>} : memref<128x128xf32, #tpu.memory_space<vmem>>, vector<128x128xf32>,
      %cst_22 = arith.constant dense<0.000000e+00> : vector<128xf32>
      %29 = vector.multi_reduction <add>, %27, %cst_22 [0] : vector<128x128xf32> to vector<128xf32>
      %30 = vector.shape_cast %29 : vector<128xf32> to vector<1x128xf32>
      %31 = arith.mulf %27, %27 : vector<128x128xf32>
      %cst_23 = arith.constant dense<0.000000e+00> : vector<128xf32>
      %32 = vector.multi_reduction <add>, %31, %cst_23 [0] : vector<128x128xf32> to vector<128xf32>
      %33 = vector.shape_cast %32 : vector<128xf32> to vector<1x128xf32>
      %cst_24 = arith.constant 0.000000e+00 : f32
      %34 = vector.broadcast %cst_24 : f32 to vector<6x128xf32>
      %35 = tpu.concatenate %30, %33, %34 in 0 : vector<1x128xf32>, vector<1x128xf32>, vector<6x128xf32> -> vector<8x128xf32>
      %c0_25 = arith.constant 0 : index
      %c0_26 = arith.constant 0 : index
      %c0_27 = arith.constant 0 : index
      %36 = vector.load %arg7[%c0_25, %c0_26, %c0_27] : memref<1x8x128xf32, #tpu.memory_space<vmem>>, vector<1x8x128xf32>
      %37 = vector.shape_cast %36 : vector<1x8x128xf32> to vector<8x128xf32>
      %38 = vector.shape_cast %35 : vector<8x128xf32> to vector<1x8x128xf32>
      tpu.vector_store %arg7[%c0_25, %c0_26, %c0_27], %38 {strides = array<i32>} : memref<1x8x128xf32, #tpu.memory_space<vmem>>, vector<1x8x128xf32>,
    } else {
    }
    return
  }
  func.func @transform_0(%arg0: i32, %arg1: i32) -> (i32, i32) {
    %c0_i32 = arith.constant 0 : i32
    return %arg0, %arg1 : i32, i32
  }
  func.func @transform_1(%arg0: i32, %arg1: i32) -> (i32, i32) {
    %c0_i32 = arith.constant 0 : i32
    %c0_i32_0 = arith.constant 0 : i32
    return %arg1, %c0_i32 : i32, i32
  }
  func.func @transform_2(%arg0: i32, %arg1: i32) -> (i32, i32) {
    %c0_i32 = arith.constant 0 : i32
    %c0_i32_0 = arith.constant 0 : i32
    %c0_i32_1 = arith.constant 0 : i32
    return %c0_i32, %c0_i32_0 : i32, i32
  }
  func.func @transform_3(%arg0: i32, %arg1: i32) -> (i32, i32) {
    %c0_i32 = arith.constant 0 : i32
    %c0_i32_0 = arith.constant 0 : i32
    %c0_i32_1 = arith.constant 0 : i32
    return %c0_i32, %c0_i32_0 : i32, i32
  }
  func.func @transform_4(%arg0: i32, %arg1: i32) -> (i32, i32) {
    %c0_i32 = arith.constant 0 : i32
    %c0_i32_0 = arith.constant 0 : i32
    return %arg0, %c0_i32 : i32, i32
  }
  func.func @transform_5(%arg0: i32, %arg1: i32) -> (i32, i32, i32) {
    %c0_i32 = arith.constant 0 : i32
    %c0_i32_0 = arith.constant 0 : i32
    %c0_i32_1 = arith.constant 0 : i32
    return %arg0, %c0_i32, %c0_i32_0 : i32, i32, i32
  }
}

module attributes {stable_mosaic.version = 11 : i64} {
  func.func @_epilogue_kernel(%arg0: i32, %arg1: memref<128x128xf32, #tpu.memory_space<vmem>>, %arg2: memref<128x128xf32, #tpu.memory_space<vmem>>, %arg3: memref<8x128xf32, #tpu.memory_space<vmem>>, %arg4: memref<128x128xf32, #tpu.memory_space<vmem>>, %arg5: memref<128x128xf32, #tpu.memory_space<vmem>>) attributes {dimension_semantics = [#tpu.dimension_semantics<parallel>], iteration_bounds = array<i64: 1>, scalar_prefetch = 0 : i64, scratch_operands = 0 : i64, tpu.core_type = #tpu.core_type<tc>, window_params = [{transform_indices = @transform_0, window_bounds = array<i64: 128, 128>}, {transform_indices = @transform_1, window_bounds = array<i64: 128, 128>}, {pipeline_mode = #tpu.pipeline_mode<synchronous>, transform_indices = @transform_2, window_bounds = array<i64: 8, 128>}, {pipeline_mode = #tpu.pipeline_mode<synchronous>, transform_indices = @transform_3, window_bounds = array<i64: 128, 128>}, {transform_indices = @transform_4, window_bounds = array<i64: 128, 128>}]} {
    %c0 = arith.constant 0 : index
    %c0_0 = arith.constant 0 : index
    %0 = vector.load %arg2[%c0, %c0_0] : memref<128x128xf32, #tpu.memory_space<vmem>>, vector<128x128xf32>
    %c0_1 = arith.constant 0 : index
    %c0_2 = arith.constant 0 : index
    %1 = vector.load %arg4[%c0_1, %c0_2] : memref<128x128xf32, #tpu.memory_space<vmem>>, vector<128x128xf32>
    %cst = arith.constant dense<0.000000e+00> : vector<128x128xf32>
    %2 = tpu.matmul %0, %1, %cst {dimension_numbers = #tpu.dot_dimension_numbers<[1], [0], [0], [1], [0, 0, 1, 1], [], []>} : vector<128x128xf32>, vector<128x128xf32>, vector<128x128xf32> -> vector<128x128xf32>
    %c0_3 = arith.constant 0 : index
    %c0_4 = arith.constant 0 : index
    %3 = vector.load %arg3[%c0_3, %c0_4] : memref<8x128xf32, #tpu.memory_space<vmem>>, vector<1x128xf32>
    %c0_5 = arith.constant 0 : index
    %c0_6 = arith.constant 0 : index
    %4 = vector.load %arg1[%c0_5, %c0_6] : memref<128x128xf32, #tpu.memory_space<vmem>>, vector<128x128xf32>
    %5 = vector.broadcast %3 : vector<1x128xf32> to vector<128x128xf32>
    %6 = arith.mulf %5, %4 : vector<128x128xf32>
    %c1 = arith.constant 1 : index
    %c0_7 = arith.constant 0 : index
    %7 = vector.load %arg3[%c1, %c0_7] : memref<8x128xf32, #tpu.memory_space<vmem>>, vector<1x128xf32>
    %8 = vector.broadcast %7 : vector<1x128xf32> to vector<128x128xf32>
    %9 = arith.addf %6, %8 : vector<128x128xf32>
    %10 = arith.addf %9, %2 : vector<128x128xf32>
    %c2 = arith.constant 2 : index
    %c0_8 = arith.constant 0 : index
    %11 = vector.load %arg3[%c2, %c0_8] : memref<8x128xf32, #tpu.memory_space<vmem>>, vector<1x128xf32>
    %12 = vector.broadcast %11 : vector<1x128xf32> to vector<128x128xf32>
    %13 = arith.addf %10, %12 : vector<128x128xf32>
    %cst_9 = arith.constant 0.000000e+00 : f32
    %14 = vector.broadcast %cst_9 : f32 to vector<128x128xf32>
    %15 = arith.maximumf %13, %14 : vector<128x128xf32>
    %c0_10 = arith.constant 0 : index
    %c0_11 = arith.constant 0 : index
    %16 = vector.load %arg5[%c0_10, %c0_11] : memref<128x128xf32, #tpu.memory_space<vmem>>, vector<128x128xf32>
    tpu.vector_store %arg5[%c0_10, %c0_11], %15 {strides = array<i32>} : memref<128x128xf32, #tpu.memory_space<vmem>>, vector<128x128xf32>,
    return
  }
  func.func @transform_0(%arg0: i32) -> (i32, i32) {
    %c0_i32 = arith.constant 0 : i32
    %c0_i32_0 = arith.constant 0 : i32
    return %arg0, %c0_i32 : i32, i32
  }
  func.func @transform_1(%arg0: i32) -> (i32, i32) {
    %c0_i32 = arith.constant 0 : i32
    %c0_i32_0 = arith.constant 0 : i32
    return %arg0, %c0_i32 : i32, i32
  }
  func.func @transform_2(%arg0: i32) -> (i32, i32) {
    %c0_i32 = arith.constant 0 : i32
    %c0_i32_0 = arith.constant 0 : i32
    %c0_i32_1 = arith.constant 0 : i32
    return %c0_i32, %c0_i32_0 : i32, i32
  }
  func.func @transform_3(%arg0: i32) -> (i32, i32) {
    %c0_i32 = arith.constant 0 : i32
    %c0_i32_0 = arith.constant 0 : i32
    %c0_i32_1 = arith.constant 0 : i32
    return %c0_i32, %c0_i32_0 : i32, i32
  }
  func.func @transform_4(%arg0: i32) -> (i32, i32) {
    %c0_i32 = arith.constant 0 : i32
    %c0_i32_0 = arith.constant 0 : i32
    return %arg0, %c0_i32 : i32, i32
  }
}

</mosaic_0001>

<llo_original>
// kernel: residual_block.3
$region0: #{residual_block.3}
  #allocation0 [shape = 'u32[]', space=smem, size = 0x4, offset = 0x4, fixed_abs, tag = 'smem constant byte address 0x4 - core index']
  #allocation1 [shape = 'u32[144,128]{1,0:T(1,128)}', space=vmem, size = 0x12000, scoped, tag = 'internal scratch']
  #allocation2 [shape = 'f32[128,128]{1,0:T(8,128)}', space=vmem, size = 0x10000, scoped, tag = 'scratch operand']
  %s0 = inlined_call_operand.vmem [shape: bf16[128,128], index: 0, kind: input, shape index: {}]
  %s1 = inlined_call_operand.vmem [shape: bf16[128,128], index: 1, kind: input, shape index: {}]
  %s2 = inlined_call_operand.vmem [shape: f32[8,128], index: 2, kind: input, shape index: {}]
  %s3 = inlined_call_operand.vmem [shape: f32[128,128], index: 3, kind: input, shape index: {}]
  %s4 = inlined_call_operand.vmem [shape: bf16[128,128], index: 4, kind: output, shape index: {0}]
  %s5 = inlined_call_operand.vmem [shape: f32[1,8,128], index: 5, kind: output, shape index: {1}]
  %6 = xla_tuple %s4, %s5
  %s7 = sld [smem:[#allocation0]]
  $region42: #{residual_block.3} parent=0
    _
  %s9 = ssub.s32 1, %s7
  %s10 = scalar_select 0, %s9, %s7
  // Predicated region
  $region2: #{residual_block.3} parent=0 // pred_check
    _
  $region3: #{residual_block.3} parent=0 // pred_check_branch
    %12 = sbr.rel (0) target = $region5
  $region4: #{residual_block.3} parent=0 // pred_region
    _
  $region5: #{residual_block.3} parent=0 // pred_fallthru
    _
  // Predicated region
  $region6: #{residual_block.3} parent=0 // pred_check
    _
  $region7: #{residual_block.3} parent=0 // pred_check_branch
    %14 = sbr.rel (0) target = $region9
  $region8: #{residual_block.3} parent=0 // pred_region
    _
  $region9: #{residual_block.3} parent=0 // pred_fallthru
    _
  // Predicated region
  $region10: #{residual_block.3} parent=0 // pred_check
    _
  $region11: #{residual_block.3} parent=0 // pred_check_branch
    %16 = sbr.rel (0) target = $region13
  $region12: #{residual_block.3} parent=0 // pred_region
    _
  $region13: #{residual_block.3} parent=0 // pred_fallthru
    _
  // Predicated region
  $region14: #{residual_block.3} parent=0 // pred_check
    _
  $region15: #{residual_block.3} parent=0 // pred_check_branch
    %18 = sbr.rel (0) target = $region17
  $region16: #{residual_block.3} parent=0 // pred_region
    _
  $region17: #{residual_block.3} parent=0 // pred_fallthru
    _
  %p20 = scmp.eq.s32.totalorder 0, 0
  // Predicated region
  $region18: #{residual_block.3} parent=0 // pred_check
    %p21 = pneg %p20
  $region19: #{residual_block.3} parent=0 // pred_check_branch
    %23 = sbr.rel (%p21) target = $region21
  $region20: #{residual_block.3} parent=0 // pred_region
    %24 = vst [vmem:[#allocation2] sm:$0xff] 0.0
    %25 = vst [vmem:[#allocation2 + $0x8] sm:$0xff] 0.0
    %26 = vst [vmem:[#allocation2 + $0x10] sm:$0xff] 0.0
    %27 = vst [vmem:[#allocation2 + $0x18] sm:$0xff] 0.0
    %28 = vst [vmem:[#allocation2 + $0x20] sm:$0xff] 0.0
    %29 = vst [vmem:[#allocation2 + $0x28] sm:$0xff] 0.0
    %30 = vst [vmem:[#allocation2 + $0x30] sm:$0xff] 0.0
    %31 = vst [vmem:[#allocation2 + $0x38] sm:$0xff] 0.0
    %32 = vst [vmem:[#allocation2 + $0x40] sm:$0xff] 0.0
    %33 = vst [vmem:[#allocation2 + $0x48] sm:$0xff] 0.0
    %34 = vst [vmem:[#allocation2 + $0x50] sm:$0xff] 0.0
    %35 = vst [vmem:[#allocation2 + $0x58] sm:$0xff] 0.0
    %36 = vst [vmem:[#allocation2 + $0x60] sm:$0xff] 0.0
    %37 = vst [vmem:[#allocation2 + $0x68] sm:$0xff] 0.0
    %38 = vst [vmem:[#allocation2 + $0x70] sm:$0xff] 0.0
    %39 = vst [vmem:[#allocation2 + $0x78] sm:$0xff] 0.0
  $region21: #{residual_block.3} parent=0 // pred_fallthru
    _
  %v40 = vld [vmem:[%s1] sm:$0xf]
  %v41 = vld [vmem:[%s1 + $0x4] sm:$0xf]
  %v42 = vld [vmem:[%s1 + $0x8] sm:$0xf]
  %v43 = vld [vmem:[%s1 + $0xc] sm:$0xf]
  %v44 = vld [vmem:[%s1 + $0x10] sm:$0xf]
  %v45 = vld [vmem:[%s1 + $0x14] sm:$0xf]
  %v46 = vld [vmem:[%s1 + $0x18] sm:$0xf]
  %v47 = vld [vmem:[%s1 + $0x1c] sm:$0xf]
  %v48 = vld [vmem:[%s1 + $0x20] sm:$0xf]
  %v49 = vld [vmem:[%s1 + $0x24] sm:$0xf]
  %v50 = vld [vmem:[%s1 + $0x28] sm:$0xf]
  %v51 = vld [vmem:[%s1 + $0x2c] sm:$0xf]
  %v52 = vld [vmem:[%s1 + $0x30] sm:$0xf]
  %v53 = vld [vmem:[%s1 + $0x34] sm:$0xf]
  %v54 = vld [vmem:[%s1 + $0x38] sm:$0xf]
  %v55 = vld [vmem:[%s1 + $0x3c] sm:$0xf]
  %v56 = vld [vmem:[#allocation2] sm:$0xff]
  %v57 = vld [vmem:[#allocation2 + $0x8] sm:$0xff]
  %v58 = vld [vmem:[#allocation2 + $0x10] sm:$0xff]
  %v59 = vld [vmem:[#allocation2 + $0x18] sm:$0xff]
  %v60 = vld [vmem:[#allocation2 + $0x20] sm:$0xff]
  %v61 = vld [vmem:[#allocation2 + $0x28] sm:$0xff]
  %v62 = vld [vmem:[#allocation2 + $0x30] sm:$0xff]
  %v63 = vld [vmem:[#allocation2 + $0x38] sm:$0xff]
  %v64 = vld [vmem:[#allocation2 + $0x40] sm:$0xff]
  %v65 = vld [vmem:[#allocation2 + $0x48] sm:$0xff]
  %v66 = vld [vmem:[#allocation2 + $0x50] sm:$0xff]
  %v67 = vld [vmem:[#allocation2 + $0x58] sm:$0xff]
  %v68 = vld [vmem:[#allocation2 + $0x60] sm:$0xff]
  %v69 = vld [vmem:[#allocation2 + $0x68] sm:$0xff]
  %v70 = vld [vmem:[#allocation2 + $0x70] sm:$0xff]
  %v71 = vld [vmem:[#allocation2 + $0x78] sm:$0xff]
  %v72 = vld [vmem:[%s0] sm:$0xf]
  %v73 = vld [vmem:[%s0 + $0x4] sm:$0xf]
  %v74 = vld [vmem:[%s0 + $0x8] sm:$0xf]
  %v75 = vld [vmem:[%s0 + $0xc] sm:$0xf]
  %v76 = vld [vmem:[%s0 + $0x10] sm:$0xf]
  %v77 = vld [vmem:[%s0 + $0x14] sm:$0xf]
  %v78 = vld [vmem:[%s0 + $0x18] sm:$0xf]
  %v79 = vld [vmem:[%s0 + $0x1c] sm:$0xf]
  %v80 = vld [vmem:[%s0 + $0x20] sm:$0xf]
  %v81 = vld [vmem:[%s0 + $0x24] sm:$0xf]
  %v82 = vld [vmem:[%s0 + $0x28] sm:$0xf]
  %v83 = vld [vmem:[%s0 + $0x2c] sm:$0xf]
  %v84 = vld [vmem:[%s0 + $0x30] sm:$0xf]
  %v85 = vld [vmem:[%s0 + $0x34] sm:$0xf]
  %v86 = vld [vmem:[%s0 + $0x38] sm:$0xf]
  %v87 = vld [vmem:[%s0 + $0x3c] sm:$0xf]
  %v104 = vunpack.c.l.b16 %v72
  %v105 = vunpack.c.l.b16 %v73
  %v106 = vunpack.c.l.b16 %v74
  %v107 = vunpack.c.l.b16 %v75
  %v108 = vunpack.c.l.b16 %v76
  %v109 = vunpack.c.l.b16 %v77
  %v110 = vunpack.c.l.b16 %v78
  %v111 = vunpack.c.l.b16 %v79
  %v112 = vunpack.c.l.b16 %v80
  %v113 = vunpack.c.l.b16 %v81
  %v114 = vunpack.c.l.b16 %v82
  %v115 = vunpack.c.l.b16 %v83
  %v116 = vunpack.c.l.b16 %v84
  %v117 = vunpack.c.l.b16 %v85
  %v118 = vunpack.c.l.b16 %v86
  %v119 = vunpack.c.l.b16 %v87
  %v120 = vpack.c.b16 %v105, %v104
  %v121 = vpack.c.b16 %v107, %v106
  %v122 = vpack.c.b16 %v109, %v108
  %v123 = vpack.c.b16 %v111, %v110
  %v124 = vpack.c.b16 %v113, %v112
  %v125 = vpack.c.b16 %v115, %v114
  %v126 = vpack.c.b16 %v117, %v116
  %v127 = vpack.c.b16 %v119, %v118
  %v152 = vunpack.c.l.b16 %v40
  %v153 = vunpack.c.l.b16 %v41
  %v154 = vunpack.c.l.b16 %v42
  %v155 = vunpack.c.l.b16 %v43
  %v156 = vunpack.c.l.b16 %v44
  %v157 = vunpack.c.l.b16 %v45
  %v158 = vunpack.c.l.b16 %v46
  %v159 = vunpack.c.l.b16 %v47
  %v160 = vunpack.c.l.b16 %v48
  %v161 = vunpack.c.l.b16 %v49
  %v162 = vunpack.c.l.b16 %v50
  %v163 = vunpack.c.l.b16 %v51
  %v164 = vunpack.c.l.b16 %v52
  %v165 = vunpack.c.l.b16 %v53
  %v166 = vunpack.c.l.b16 %v54
  %v167 = vunpack.c.l.b16 %v55
  %v168 = vpack.c.b16 %v153, %v152
  %v169 = vpack.c.b16 %v155, %v154
  %v170 = vpack.c.b16 %v157, %v156
  %v171 = vpack.c.b16 %v159, %v158
  %v172 = vpack.c.b16 %v161, %v160
  %v173 = vpack.c.b16 %v163, %v162
  %v174 = vpack.c.b16 %v165, %v164
  %v175 = vpack.c.b16 %v167, %v166
  %184 = vmatprep.subr.bf16.mxu0 0
  %185 = vmatpush1.bf16.msra.mxu0 %v168
  %186 = vmatprep.subr.bf16.mxu0 0
  %187 = vmatpush1.bf16.msra.mxu0 %v169
  %188 = vmatprep.subr.bf16.mxu0 0
  %189 = vmatpush1.bf16.msra.mxu0 %v170
  %190 = vmatprep.subr.bf16.mxu0 0
  %191 = vmatpush1.bf16.msra.mxu0 %v171
  %192 = vmatprep.subr.bf16.mxu0 0
  %193 = vmatpush1.bf16.msra.mxu0 %v172
  %194 = vmatprep.subr.bf16.mxu0 0
  %195 = vmatpush1.bf16.msra.mxu0 %v173
  %196 = vmatprep.subr.bf16.mxu0 0
  %197 = vmatpush1.bf16.msra.mxu0 %v174
  %198 = vmatprep.subr.bf16.mxu0 0
  %199 = vmatpush1.bf16.msra.mxu0 %v175
  %200 = vmatprep.subr.bf16.mxu0 0
  %201 = vmatpush1.bf16.msra.mxu0 0
  %202 = vmatprep.subr.bf16.mxu0 0
  %203 = vmatpush1.bf16.msra.mxu0 0
  %204 = vmatprep.subr.bf16.mxu0 0
  %205 = vmatpush1.bf16.msra.mxu0 0
  %206 = vmatprep.subr.bf16.mxu0 0
  %207 = vmatpush1.bf16.msra.mxu0 0
  %208 = vmatprep.subr.bf16.mxu0 0
  %209 = vmatpush1.bf16.msra.mxu0 0
  %210 = vmatprep.subr.bf16.mxu0 0
  %211 = vmatpush1.bf16.msra.mxu0 0
  %212 = vmatprep.subr.bf16.mxu0 0
  %213 = vmatpush1.bf16.msra.mxu0 0
  %214 = vmatprep.subr.bf16.mxu0 0
  %215 = vmatpush1.bf16.msra.mxu0 0
  %216 = vmatprep.mubr.bf16.mxu0 0
  %217 = vmatmul.mubr.bf16.gmra.mrb[0].mxu0 %v120
  %v218 = vpop.f32.mrb[0].mxu0
  %v219 = vadd.f32 0.0, %v218
  %v220 = vpop.f32.mrb[0].mxu0
  %v221 = vpop.f32.mrb[0].mxu0
  %v222 = vadd.f32 0.0, %v221
  %v223 = vpop.f32.mrb[0].mxu0
  %224 = vmatprep.mubr.bf16.mxu0 0
  %225 = vmatmul.mubr.bf16.gmra.mrb[0].mxu0 %v121
  %v226 = vpop.f32.mrb[0].mxu0
  %v227 = vadd.f32 0.0, %v226
  %v228 = vpop.f32.mrb[0].mxu0
  %v229 = vpop.f32.mrb[0].mxu0
  %v230 = vadd.f32 0.0, %v229
  %v231 = vpop.f32.mrb[0].mxu0
  %232 = vmatprep.mubr.bf16.mxu0 0
  %233 = vmatmul.mubr.bf16.gmra.mrb[0].mxu0 %v122
  %v234 = vpop.f32.mrb[0].mxu0
  %v235 = vadd.f32 0.0, %v234
  %v236 = vpop.f32.mrb[0].mxu0
  %v237 = vpop.f32.mrb[0].mxu0
  %v238 = vadd.f32 0.0, %v237
  %v239 = vpop.f32.mrb[0].mxu0
  %240 = vmatprep.mubr.bf16.mxu0 0
  %241 = vmatmul.mubr.bf16.gmra.mrb[0].mxu0 %v123
  %v242 = vpop.f32.mrb[0].mxu0
  %v243 = vadd.f32 0.0, %v242
  %v244 = vpop.f32.mrb[0].mxu0
  %v245 = vpop.f32.mrb[0].mxu0
  %v246 = vadd.f32 0.0, %v245
  %v247 = vpop.f32.mrb[0].mxu0
  %248 = vmatprep.mubr.bf16.mxu0 0
  %249 = vmatmul.mubr.bf16.gmra.mrb[0].mxu0 %v124
  %v250 = vpop.f32.mrb[0].mxu0
  %v251 = vadd.f32 0.0, %v250
  %v252 = vpop.f32.mrb[0].mxu0
  %v253 = vpop.f32.mrb[0].mxu0
  %v254 = vadd.f32 0.0, %v253
  %v255 = vpop.f32.mrb[0].mxu0
  %256 = vmatprep.mubr.bf16.mxu0 0
  %257 = vmatmul.mubr.bf16.gmra.mrb[0].mxu0 %v125
  %v258 = vpop.f32.mrb[0].mxu0
  %v259 = vadd.f32 0.0, %v258
  %v260 = vpop.f32.mrb[0].mxu0
  %v261 = vpop.f32.mrb[0].mxu0
  %v262 = vadd.f32 0.0, %v261
  %v263 = vpop.f32.mrb[0].mxu0
  %264 = vmatprep.mubr.bf16.mxu0 0
  %265 = vmatmul.mubr.bf16.gmra.mrb[0].mxu0 %v126
  %v266 = vpop.f32.mrb[0].mxu0
  %v267 = vadd.f32 0.0, %v266
  %v268 = vpop.f32.mrb[0].mxu0
  %v269 = vpop.f32.mrb[0].mxu0
  %v270 = vadd.f32 0.0, %v269
  %v271 = vpop.f32.mrb[0].mxu0
  %272 = vmatprep.mubr.bf16.mxu0 0
  %273 = vmatmul.mubr.bf16.gmra.mrb[0].mxu0 %v127
  %v274 = vpop.f32.mrb[0].mxu0
  %v275 = vadd.f32 0.0, %v274
  %v276 = vpop.f32.mrb[0].mxu0
  %v277 = vpop.f32.mrb[0].mxu0
  %v278 = vadd.f32 0.0, %v277
  %v279 = vpop.f32.mrb[0].mxu0
  %280 = vdwg.mxu0
  %v281 = vadd.f32 %v56, %v219
  %v282 = vadd.f32 %v57, %v222
  %v283 = vadd.f32 %v58, %v227
  %v284 = vadd.f32 %v59, %v230
  %v285 = vadd.f32 %v60, %v235
  %v286 = vadd.f32 %v61, %v238
  %v287 = vadd.f32 %v62, %v243
  %v288 = vadd.f32 %v63, %v246
  %v289 = vadd.f32 %v64, %v251
  %v290 = vadd.f32 %v65, %v254
  %v291 = vadd.f32 %v66, %v259
  %v292 = vadd.f32 %v67, %v262
  %v293 = vadd.f32 %v68, %v267
  %v294 = vadd.f32 %v69, %v270
  %v295 = vadd.f32 %v70, %v275
  %v296 = vadd.f32 %v71, %v278
  %297 = vst [vmem:[#allocation2] sm:$0xff] %v281
  %298 = vst [vmem:[#allocation2 + $0x8] sm:$0xff] %v282
  %299 = vst [vmem:[#allocation2 + $0x10] sm:$0xff] %v283
  %300 = vst [vmem:[#allocation2 + $0x18] sm:$0xff] %v284
  %301 = vst [vmem:[#allocation2 + $0x20] sm:$0xff] %v285
  %302 = vst [vmem:[#allocation2 + $0x28] sm:$0xff] %v286
  %303 = vst [vmem:[#allocation2 + $0x30] sm:$0xff] %v287
  %304 = vst [vmem:[#allocation2 + $0x38] sm:$0xff] %v288
  %305 = vst [vmem:[#allocation2 + $0x40] sm:$0xff] %v289
  %306 = vst [vmem:[#allocation2 + $0x48] sm:$0xff] %v290
  %307 = vst [vmem:[#allocation2 + $0x50] sm:$0xff] %v291
  %308 = vst [vmem:[#allocation2 + $0x58] sm:$0xff] %v292
  %309 = vst [vmem:[#allocation2 + $0x60] sm:$0xff] %v293
  %310 = vst [vmem:[#allocation2 + $0x68] sm:$0xff] %v294
  %311 = vst [vmem:[#allocation2 + $0x70] sm:$0xff] %v295
  %312 = vst [vmem:[#allocation2 + $0x78] sm:$0xff] %v296
  // Predicated region
  $region22: #{residual_block.3} parent=0 // pred_check
    %p313 = pneg %p20
  $region23: #{residual_block.3} parent=0 // pred_check_branch
    %315 = sbr.rel (%p313) target = $region25
  $region24: #{residual_block.3} parent=0 // pred_region
    %v316 = vld [vmem:[#allocation2] sm:$0xff]
    %v317 = vld [vmem:[#allocation2 + $0x8] sm:$0xff]
    %v318 = vld [vmem:[#allocation2 + $0x10] sm:$0xff]
    %v319 = vld [vmem:[#allocation2 + $0x18] sm:$0xff]
    %v320 = vld [vmem:[#allocation2 + $0x20] sm:$0xff]
    %v321 = vld [vmem:[#allocation2 + $0x28] sm:$0xff]
    %v322 = vld [vmem:[#allocation2 + $0x30] sm:$0xff]
    %v323 = vld [vmem:[#allocation2 + $0x38] sm:$0xff]
    %v324 = vld [vmem:[#allocation2 + $0x40] sm:$0xff]
    %v325 = vld [vmem:[#allocation2 + $0x48] sm:$0xff]
    %v326 = vld [vmem:[#allocation2 + $0x50] sm:$0xff]
    %v327 = vld [vmem:[#allocation2 + $0x58] sm:$0xff]
    %v328 = vld [vmem:[#allocation2 + $0x60] sm:$0xff]
    %v329 = vld [vmem:[#allocation2 + $0x68] sm:$0xff]
    %v330 = vld [vmem:[#allocation2 + $0x70] sm:$0xff]
    %v331 = vld [vmem:[#allocation2 + $0x78] sm:$0xff]
    %v332 = vld [vmem:[%s3] sm:$0xff]
    %v333 = vld [vmem:[%s3 + $0x8] sm:$0xff]
    %v334 = vld [vmem:[%s3 + $0x10] sm:$0xff]
    %v335 = vld [vmem:[%s3 + $0x18] sm:$0xff]
    %v336 = vld [vmem:[%s3 + $0x20] sm:$0xff]
    %v337 = vld [vmem:[%s3 + $0x28] sm:$0xff]
    %v338 = vld [vmem:[%s3 + $0x30] sm:$0xff]
    %v339 = vld [vmem:[%s3 + $0x38] sm:$0xff]
    %v340 = vld [vmem:[%s3 + $0x40] sm:$0xff]
    %v341 = vld [vmem:[%s3 + $0x48] sm:$0xff]
    %v342 = vld [vmem:[%s3 + $0x50] sm:$0xff]
    %v343 = vld [vmem:[%s3 + $0x58] sm:$0xff]
    %v344 = vld [vmem:[%s3 + $0x60] sm:$0xff]
    %v345 = vld [vmem:[%s3 + $0x68] sm:$0xff]
    %v346 = vld [vmem:[%s3 + $0x70] sm:$0xff]
    %v347 = vld [vmem:[%s3 + $0x78] sm:$0xff]
    %v348 = vld [vmem:[%s2 + $0x2] sm:$0x1]
    %v349 = vlaneseq
    %v350 = vshrl.u32 %v349, 7
    %v351 = vsub.s32 0, %v350
    %v352 = vrot.slane %v348, %v351
    %353 = vmatprep.subr.mxu0 0.0
    %354 = vmatpush1.msra.mxu0 %v332
    %355 = vmatprep.subr.mxu0 0.0
    %356 = vmatpush1.msra.mxu0 %v333
    %357 = vmatprep.subr.mxu0 0.0
    %358 = vmatpush1.msra.mxu0 %v334
    %359 = vmatprep.subr.mxu0 0.0
    %360 = vmatpush1.msra.mxu0 %v335
    %361 = vmatprep.subr.mxu0 0.0
    %362 = vmatpush1.msra.mxu0 %v336
    %363 = vmatprep.subr.mxu0 0.0
    %364 = vmatpush1.msra.mxu0 %v337
    %365 = vmatprep.subr.mxu0 0.0
    %366 = vmatpush1.msra.mxu0 %v338
    %367 = vmatprep.subr.mxu0 0.0
    %368 = vmatpush1.msra.mxu0 %v339
    %369 = vmatprep.subr.mxu0 0.0
    %370 = vmatpush1.msra.mxu0 %v340
    %371 = vmatprep.subr.mxu0 0.0
    %372 = vmatpush1.msra.mxu0 %v341
    %373 = vmatprep.subr.mxu0 0.0
    %374 = vmatpush1.msra.mxu0 %v342
    %375 = vmatprep.subr.mxu0 0.0
    %376 = vmatpush1.msra.mxu0 %v343
    %377 = vmatprep.subr.mxu0 0.0
    %378 = vmatpush1.msra.mxu0 %v344
    %379 = vmatprep.subr.mxu0 0.0
    %380 = vmatpush1.msra.mxu0 %v345
    %381 = vmatprep.subr.mxu0 0.0
    %382 = vmatpush1.msra.mxu0 %v346
    %383 = vmatprep.subr.mxu0 0.0
    %384 = vmatpush1.msra.mxu0 %v347
    %385 = vmatprep.subr.mxu0 0.0
    %386 = vmatpush1.msra.mxu0 0.0
    %387 = vmatprep.subr.mxu0 0.0
    %388 = vmatpush1.msra.mxu0 0.0
    %389 = vmatprep.subr.mxu0 0.0
    %390 = vmatpush1.msra.mxu0 0.0
    %391 = vmatprep.subr.mxu0 0.0
    %392 = vmatpush1.msra.mxu0 0.0
    %393 = vmatprep.subr.mxu0 0.0
    %394 = vmatpush1.msra.mxu0 0.0
    %395 = vmatprep.subr.mxu0 0.0
    %396 = vmatpush1.msra.mxu0 0.0
    %397 = vmatprep.subr.mxu0 0.0
    %398 = vmatpush1.msra.mxu0 0.0
    %399 = vmatprep.subr.mxu0 0.0
    %400 = vmatpush1.msra.mxu0 0.0
    %401 = vmatprep.subr.mxu0 0.0
    %402 = vmatpush1.msra.mxu0 0.0
    %403 = vmatprep.subr.mxu0 0.0
    %404 = vmatpush1.msra.mxu0 0.0
    %405 = vmatprep.subr.mxu0 0.0
    %406 = vmatpush1.msra.mxu0 0.0
    %407 = vmatprep.subr.mxu0 0.0
    %408 = vmatpush1.msra.mxu0 0.0
    %409 = vmatprep.subr.mxu0 0.0
    %410 = vmatpush1.msra.mxu0 0.0
    %411 = vmatprep.subr.mxu0 0.0
    %412 = vmatpush1.msra.mxu0 0.0
    %413 = vmatprep.subr.mxu0 0.0
    %414 = vmatpush1.msra.mxu0 0.0
    %415 = vmatprep.subr.mxu0 0.0
    %416 = vmatpush1.msra.mxu0 0.0
    %417 = vmatprep.mubr.f32.mxu0 0.0
    %418 = vmatmul.mubr.f32.gmra.mrb[0].mxu0 %v316
    %v419 = vpop.f32.mrb[0].mxu0
    %v420 = vadd.f32 %v352, %v419
    %v421 = vpop.f32.mrb[0].mxu0
    %422 = vmatprep.mubr.f32.mxu0 0.0
    %423 = vmatmul.mubr.f32.gmra.mrb[0].mxu0 %v317
    %v424 = vpop.f32.mrb[0].mxu0
    %v425 = vadd.f32 %v352, %v424
    %v426 = vpop.f32.mrb[0].mxu0
    %427 = vmatprep.mubr.f32.mxu0 0.0
    %428 = vmatmul.mubr.f32.gmra.mrb[0].mxu0 %v318
    %v429 = vpop.f32.mrb[0].mxu0
    %v430 = vadd.f32 %v352, %v429
    %v431 = vpop.f32.mrb[0].mxu0
    %432 = vmatprep.mubr.f32.mxu0 0.0
    %433 = vmatmul.mubr.f32.gmra.mrb[0].mxu0 %v319
    %v434 = vpop.f32.mrb[0].mxu0
    %v435 = vadd.f32 %v352, %v434
    %v436 = vpop.f32.mrb[0].mxu0
    %437 = vmatprep.mubr.f32.mxu0 0.0
    %438 = vmatmul.mubr.f32.gmra.mrb[0].mxu0 %v320
    %v439 = vpop.f32.mrb[0].mxu0
    %v440 = vadd.f32 %v352, %v439
    %v441 = vpop.f32.mrb[0].mxu0
    %442 = vmatprep.mubr.f32.mxu0 0.0
    %443 = vmatmul.mubr.f32.gmra.mrb[0].mxu0 %v321
    %v444 = vpop.f32.mrb[0].mxu0
    %v445 = vadd.f32 %v352, %v444
    %v446 = vpop.f32.mrb[0].mxu0
    %447 = vmatprep.mubr.f32.mxu0 0.0
    %448 = vmatmul.mubr.f32.gmra.mrb[0].mxu0 %v322
    %v449 = vpop.f32.mrb[0].mxu0
    %v450 = vadd.f32 %v352, %v449
    %v451 = vpop.f32.mrb[0].mxu0
    %452 = vmatprep.mubr.f32.mxu0 0.0
    %453 = vmatmul.mubr.f32.gmra.mrb[0].mxu0 %v323
    %v454 = vpop.f32.mrb[0].mxu0
    %v455 = vadd.f32 %v352, %v454
    %v456 = vpop.f32.mrb[0].mxu0
    %457 = vmatprep.mubr.f32.mxu0 0.0
    %458 = vmatmul.mubr.f32.gmra.mrb[0].mxu0 %v324
    %v459 = vpop.f32.mrb[0].mxu0
    %v460 = vadd.f32 %v352, %v459
    %v461 = vpop.f32.mrb[0].mxu0
    %462 = vmatprep.mubr.f32.mxu0 0.0
    %463 = vmatmul.mubr.f32.gmra.mrb[0].mxu0 %v325
    %v464 = vpop.f32.mrb[0].mxu0
    %v465 = vadd.f32 %v352, %v464
    %v466 = vpop.f32.mrb[0].mxu0
    %467 = vmatprep.mubr.f32.mxu0 0.0
    %468 = vmatmul.mubr.f32.gmra.mrb[0].mxu0 %v326
    %v469 = vpop.f32.mrb[0].mxu0
    %v470 = vadd.f32 %v352, %v469
    %v471 = vpop.f32.mrb[0].mxu0
    %472 = vmatprep.mubr.f32.mxu0 0.0
    %473 = vmatmul.mubr.f32.gmra.mrb[0].mxu0 %v327
    %v474 = vpop.f32.mrb[0].mxu0
    %v475 = vadd.f32 %v352, %v474
    %v476 = vpop.f32.mrb[0].mxu0
    %477 = vmatprep.mubr.f32.mxu0 0.0
    %478 = vmatmul.mubr.f32.gmra.mrb[0].mxu0 %v328
    %v479 = vpop.f32.mrb[0].mxu0
    %v480 = vadd.f32 %v352, %v479
    %v481 = vpop.f32.mrb[0].mxu0
    %482 = vmatprep.mubr.f32.mxu0 0.0
    %483 = vmatmul.mubr.f32.gmra.mrb[0].mxu0 %v329
    %v484 = vpop.f32.mrb[0].mxu0
    %v485 = vadd.f32 %v352, %v484
    %v486 = vpop.f32.mrb[0].mxu0
    %487 = vmatprep.mubr.f32.mxu0 0.0
    %488 = vmatmul.mubr.f32.gmra.mrb[0].mxu0 %v330
    %v489 = vpop.f32.mrb[0].mxu0
    %v490 = vadd.f32 %v352, %v489
    %v491 = vpop.f32.mrb[0].mxu0
    %492 = vmatprep.mubr.f32.mxu0 0.0
    %493 = vmatmul.mubr.f32.gmra.mrb[0].mxu0 %v331
    %v494 = vpop.f32.mrb[0].mxu0
    %v495 = vadd.f32 %v352, %v494
    %v496 = vpop.f32.mrb[0].mxu0
    %497 = vdwg.mxu0
    %v498 = vpack.c.bf16 %v425, %v420
    %v499 = vpack.c.bf16 %v435, %v430
    %v500 = vpack.c.bf16 %v445, %v440
    %v501 = vpack.c.bf16 %v455, %v450
    %v502 = vpack.c.bf16 %v465, %v460
    %v503 = vpack.c.bf16 %v475, %v470
    %v504 = vpack.c.bf16 %v485, %v480
    %v505 = vpack.c.bf16 %v495, %v490
    %v514 = vunpack.c.l.b16 %v498
    %v515 = vunpack.c.h.b16 %v498
    %v516 = vunpack.c.l.b16 %v499
    %v517 = vunpack.c.h.b16 %v499
    %v518 = vunpack.c.l.b16 %v500
    %v519 = vunpack.c.h.b16 %v500
    %v520 = vunpack.c.l.b16 %v501
    %v521 = vunpack.c.h.b16 %v501
    %v522 = vunpack.c.l.b16 %v502
    %v523 = vunpack.c.h.b16 %v502
    %v524 = vunpack.c.l.b16 %v503
    %v525 = vunpack.c.h.b16 %v503
    %v526 = vunpack.c.l.b16 %v504
    %v527 = vunpack.c.h.b16 %v504
    %v528 = vunpack.c.l.b16 %v505
    %v529 = vunpack.c.h.b16 %v505
    %v530 = vpack.c.b16 %v514, %v514
    %v531 = vpack.c.b16 %v515, %v515
    %v532 = vpack.c.b16 %v516, %v516
    %v533 = vpack.c.b16 %v517, %v517
    %v534 = vpack.c.b16 %v518, %v518
    %v535 = vpack.c.b16 %v519, %v519
    %v536 = vpack.c.b16 %v520, %v520
    %v537 = vpack.c.b16 %v521, %v521
    %v538 = vpack.c.b16 %v522, %v522
    %v539 = vpack.c.b16 %v523, %v523
    %v540 = vpack.c.b16 %v524, %v524
    %v541 = vpack.c.b16 %v525, %v525
    %v542 = vpack.c.b16 %v526, %v526
    %v543 = vpack.c.b16 %v527, %v527
    %v544 = vpack.c.b16 %v528, %v528
    %v545 = vpack.c.b16 %v529, %v529
    %562 = vst [vmem:[%s4] sm:$0xf] %v530
    %563 = vst [vmem:[%s4 + $0x4] sm:$0xf] %v531
    %564 = vst [vmem:[%s4 + $0x8] sm:$0xf] %v532
    %565 = vst [vmem:[%s4 + $0xc] sm:$0xf] %v533
    %566 = vst [vmem:[%s4 + $0x10] sm:$0xf] %v534
    %567 = vst [vmem:[%s4 + $0x14] sm:$0xf] %v535
    %568 = vst [vmem:[%s4 + $0x18] sm:$0xf] %v536
    %569 = vst [vmem:[%s4 + $0x1c] sm:$0xf] %v537
    %570 = vst [vmem:[%s4 + $0x20] sm:$0xf] %v538
    %571 = vst [vmem:[%s4 + $0x24] sm:$0xf] %v539
    %572 = vst [vmem:[%s4 + $0x28] sm:$0xf] %v540
    %573 = vst [vmem:[%s4 + $0x2c] sm:$0xf] %v541
    %574 = vst [vmem:[%s4 + $0x30] sm:$0xf] %v542
    %575 = vst [vmem:[%s4 + $0x34] sm:$0xf] %v543
    %576 = vst [vmem:[%s4 + $0x38] sm:$0xf] %v544
    %577 = vst [vmem:[%s4 + $0x3c] sm:$0xf] %v545
    %v578 = vadd.f32 %v420, %v425
    %v579 = vadd.f32 %v578, %v430
    %v580 = vadd.f32 %v579, %v435
    %v581 = vadd.f32 %v580, %v440
    %v582 = vadd.f32 %v581, %v445
    %v583 = vadd.f32 %v582, %v450
    %v584 = vadd.f32 %v583, %v455
    %v585 = vadd.f32 %v584, %v460
    %v586 = vadd.f32 %v585, %v465
    %v587 = vadd.f32 %v586, %v470
    %v588 = vadd.f32 %v587, %v475
    %v589 = vadd.f32 %v588, %v480
    %v590 = vadd.f32 %v589, %v485
    %v591 = vadd.f32 %v590, %v490
    %v592 = vadd.f32 %v591, %v495
    %v593 = vrot.slane %v592, 4
    %v594 = vadd.f32 %v592, %v593
    %v595 = vrot.slane %v594, 2
    %v596 = vadd.f32 %v594, %v595
    %v597 = vrot.slane %v596, 1
    %v598 = vadd.f32 %v596, %v597
    %v599 = vmul.f32 %v420, %v420
    %v600 = vmul.f32 %v425, %v425
    %v601 = vmul.f32 %v430, %v430
    %v602 = vmul.f32 %v435, %v435
    %v603 = vmul.f32 %v440, %v440
    %v604 = vmul.f32 %v445, %v445
    %v605 = vmul.f32 %v450, %v450
    %v606 = vmul.f32 %v455, %v455
    %v607 = vmul.f32 %v460, %v460
    %v608 = vmul.f32 %v465, %v465
    %v609 = vmul.f32 %v470, %v470
    %v610 = vmul.f32 %v475, %v475
    %v611 = vmul.f32 %v480, %v480
    %v612 = vmul.f32 %v485, %v485
    %v613 = vmul.f32 %v490, %v490
    %v614 = vmul.f32 %v495, %v495
    %v615 = vadd.f32 %v599, %v600
    %v616 = vadd.f32 %v615, %v601
    %v617 = vadd.f32 %v616, %v602
    %v618 = vadd.f32 %v617, %v603
    %v619 = vadd.f32 %v618, %v604
    %v620 = vadd.f32 %v619, %v605
    %v621 = vadd.f32 %v620, %v606
    %v622 = vadd.f32 %v621, %v607
    %v623 = vadd.f32 %v622, %v608
    %v624 = vadd.f32 %v623, %v609
    %v625 = vadd.f32 %v624, %v610
    %v626 = vadd.f32 %v625, %v611
    %v627 = vadd.f32 %v626, %v612
    %v628 = vadd.f32 %v627, %v613
    %v629 = vadd.f32 %v628, %v614
    %v630 = vrot.slane %v629, 4
    %v631 = vadd.f32 %v629, %v630
    %v632 = vrot.slane %v631, 2
    %v633 = vadd.f32 %v631, %v632
    %v634 = vrot.slane %v633, 1
    %v635 = vadd.f32 %v633, %v634
    %vm636 = vcmask 1040384
    %v637 = vsel %vm636, %v598, %v635
    %vm638 = vcmask 1041408
    %v639 = vsel %vm638, %v637, 0.0
    %640 = vst [vmem:[%s5] sm:$0xff] %v639
  $region25: #{residual_block.3} parent=0 // pred_fallthru
    _
  // Predicated region
  $region26: #{residual_block.3} parent=0 // pred_check
    _
  $region27: #{residual_block.3} parent=0 // pred_check_branch
    %642 = sbr.rel (0) target = $region29
  $region28: #{residual_block.3} parent=0 // pred_region
    _
  $region29: #{residual_block.3} parent=0 // pred_fallthru
    _
  // Predicated region
  $region30: #{residual_block.3} parent=0 // pred_check
    _
  $region31: #{residual_block.3} parent=0 // pred_check_branch
    %644 = sbr.rel (0) target = $region33
  $region32: #{residual_block.3} parent=0 // pred_region
    _
  $region33: #{residual_block.3} parent=0 // pred_fallthru
    _
  // Predicated region
  $region34: #{residual_block.3} parent=0 // pred_check
    _
  $region35: #{residual_block.3} parent=0 // pred_check_branch
    %646 = sbr.rel (0) target = $region37
  $region36: #{residual_block.3} parent=0 // pred_region
    _
  $region37: #{residual_block.3} parent=0 // pred_fallthru
    _
  // Predicated region
  $region38: #{residual_block.3} parent=0 // pred_check
    _
  $region39: #{residual_block.3} parent=0 // pred_check_branch
    %648 = sbr.rel (0) target = $region41
  $region40: #{residual_block.3} parent=0 // pred_region
    _
  $region41: #{residual_block.3} parent=0 // pred_fallthru
    _

// kernel: residual_block.4
$region0: #{residual_block.4}
  #allocation0 [shape = 'u32[]', space=smem, size = 0x4, offset = 0x4, fixed_abs, tag = 'smem constant byte address 0x4 - core index']
  #allocation1 [shape = 'u32[144,128]{1,0:T(1,128)}', space=vmem, size = 0x12000, scoped, tag = 'internal scratch']
  #allocation2 [shape = 'f32[128,128]{1,0:T(8,128)}', space=vmem, size = 0x10000, scoped, tag = 'scratch operand']
  %s0 = inlined_call_operand.vmem [shape: bf16[128,128], index: 0, kind: input, shape index: {}]
  %s1 = inlined_call_operand.vmem [shape: bf16[128,128], index: 1, kind: input, shape index: {}]
  %s2 = inlined_call_operand.vmem [shape: f32[8,128], index: 2, kind: input, shape index: {}]
  %s3 = inlined_call_operand.vmem [shape: f32[128,128], index: 3, kind: input, shape index: {}]
  %s4 = inlined_call_operand.vmem [shape: f32[128,128], index: 4, kind: output, shape index: {0}]
  %s5 = inlined_call_operand.vmem [shape: f32[1,8,128], index: 5, kind: output, shape index: {1}]
  %6 = xla_tuple %s4, %s5
  %s7 = sld [smem:[#allocation0]]
  $region42: #{residual_block.4} parent=0
    _
  %s9 = ssub.s32 1, %s7
  %s10 = scalar_select 0, %s9, %s7
  // Predicated region
  $region2: #{residual_block.4} parent=0 // pred_check
    _
  $region3: #{residual_block.4} parent=0 // pred_check_branch
    %12 = sbr.rel (0) target = $region5
  $region4: #{residual_block.4} parent=0 // pred_region
    _
  $region5: #{residual_block.4} parent=0 // pred_fallthru
    _
  // Predicated region
  $region6: #{residual_block.4} parent=0 // pred_check
    _
  $region7: #{residual_block.4} parent=0 // pred_check_branch
    %14 = sbr.rel (0) target = $region9
  $region8: #{residual_block.4} parent=0 // pred_region
    _
  $region9: #{residual_block.4} parent=0 // pred_fallthru
    _
  // Predicated region
  $region10: #{residual_block.4} parent=0 // pred_check
    _
  $region11: #{residual_block.4} parent=0 // pred_check_branch
    %16 = sbr.rel (0) target = $region13
  $region12: #{residual_block.4} parent=0 // pred_region
    _
  $region13: #{residual_block.4} parent=0 // pred_fallthru
    _
  // Predicated region
  $region14: #{residual_block.4} parent=0 // pred_check
    _
  $region15: #{residual_block.4} parent=0 // pred_check_branch
    %18 = sbr.rel (0) target = $region17
  $region16: #{residual_block.4} parent=0 // pred_region
    _
  $region17: #{residual_block.4} parent=0 // pred_fallthru
    _
  %p20 = scmp.eq.s32.totalorder 0, 0
  // Predicated region
  $region18: #{residual_block.4} parent=0 // pred_check
    %p21 = pneg %p20
  $region19: #{residual_block.4} parent=0 // pred_check_branch
    %23 = sbr.rel (%p21) target = $region21
  $region20: #{residual_block.4} parent=0 // pred_region
    %24 = vst [vmem:[#allocation2] sm:$0xff] 0.0
    %25 = vst [vmem:[#allocation2 + $0x8] sm:$0xff] 0.0
    %26 = vst [vmem:[#allocation2 + $0x10] sm:$0xff] 0.0
    %27 = vst [vmem:[#allocation2 + $0x18] sm:$0xff] 0.0
    %28 = vst [vmem:[#allocation2 + $0x20] sm:$0xff] 0.0
    %29 = vst [vmem:[#allocation2 + $0x28] sm:$0xff] 0.0
    %30 = vst [vmem:[#allocation2 + $0x30] sm:$0xff] 0.0
    %31 = vst [vmem:[#allocation2 + $0x38] sm:$0xff] 0.0
    %32 = vst [vmem:[#allocation2 + $0x40] sm:$0xff] 0.0
    %33 = vst [vmem:[#allocation2 + $0x48] sm:$0xff] 0.0
    %34 = vst [vmem:[#allocation2 + $0x50] sm:$0xff] 0.0
    %35 = vst [vmem:[#allocation2 + $0x58] sm:$0xff] 0.0
    %36 = vst [vmem:[#allocation2 + $0x60] sm:$0xff] 0.0
    %37 = vst [vmem:[#allocation2 + $0x68] sm:$0xff] 0.0
    %38 = vst [vmem:[#allocation2 + $0x70] sm:$0xff] 0.0
    %39 = vst [vmem:[#allocation2 + $0x78] sm:$0xff] 0.0
  $region21: #{residual_block.4} parent=0 // pred_fallthru
    _
  %v40 = vld [vmem:[%s1] sm:$0xf]
  %v41 = vld [vmem:[%s1 + $0x4] sm:$0xf]
  %v42 = vld [vmem:[%s1 + $0x8] sm:$0xf]
  %v43 = vld [vmem:[%s1 + $0xc] sm:$0xf]
  %v44 = vld [vmem:[%s1 + $0x10] sm:$0xf]
  %v45 = vld [vmem:[%s1 + $0x14] sm:$0xf]
  %v46 = vld [vmem:[%s1 + $0x18] sm:$0xf]
  %v47 = vld [vmem:[%s1 + $0x1c] sm:$0xf]
  %v48 = vld [vmem:[%s1 + $0x20] sm:$0xf]
  %v49 = vld [vmem:[%s1 + $0x24] sm:$0xf]
  %v50 = vld [vmem:[%s1 + $0x28] sm:$0xf]
  %v51 = vld [vmem:[%s1 + $0x2c] sm:$0xf]
  %v52 = vld [vmem:[%s1 + $0x30] sm:$0xf]
  %v53 = vld [vmem:[%s1 + $0x34] sm:$0xf]
  %v54 = vld [vmem:[%s1 + $0x38] sm:$0xf]
  %v55 = vld [vmem:[%s1 + $0x3c] sm:$0xf]
  %v56 = vld [vmem:[%s2] sm:$0x1]
  %v57 = vunpack.c.l.bf16 %v40
  %v58 = vunpack.c.l.bf16 %v41
  %v59 = vunpack.c.l.bf16 %v42
  %v60 = vunpack.c.l.bf16 %v43
  %v61 = vunpack.c.l.bf16 %v44
  %v62 = vunpack.c.l.bf16 %v45
  %v63 = vunpack.c.l.bf16 %v46
  %v64 = vunpack.c.l.bf16 %v47
  %v65 = vunpack.c.l.bf16 %v48
  %v66 = vunpack.c.l.bf16 %v49
  %v67 = vunpack.c.l.bf16 %v50
  %v68 = vunpack.c.l.bf16 %v51
  %v69 = vunpack.c.l.bf16 %v52
  %v70 = vunpack.c.l.bf16 %v53
  %v71 = vunpack.c.l.bf16 %v54
  %v72 = vunpack.c.l.bf16 %v55
  %v73 = vlaneseq
  %v74 = vshrl.u32 %v73, 7
  %v75 = vsub.s32 0, %v74
  %v76 = vrot.slane %v56, %v75
  %v77 = vmul.f32 %v76, %v57
  %v78 = vmul.f32 %v76, %v58
  %v79 = vmul.f32 %v76, %v59
  %v80 = vmul.f32 %v76, %v60
  %v81 = vmul.f32 %v76, %v61
  %v82 = vmul.f32 %v76, %v62
  %v83 = vmul.f32 %v76, %v63
  %v84 = vmul.f32 %v76, %v64
  %v85 = vmul.f32 %v76, %v65
  %v86 = vmul.f32 %v76, %v66
  %v87 = vmul.f32 %v76, %v67
  %v88 = vmul.f32 %v76, %v68
  %v89 = vmul.f32 %v76, %v69
  %v90 = vmul.f32 %v76, %v70
  %v91 = vmul.f32 %v76, %v71
  %v92 = vmul.f32 %v76, %v72
  %v93 = vld [vmem:[%s2 + $0x1] sm:$0x1]
  %v94 = vlaneseq
  %v95 = vshrl.u32 %v94, 7
  %v96 = vsub.s32 0, %v95
  %v97 = vrot.slane %v93, %v96
  %v98 = vadd.f32 %v77, %v97
  %v99 = vadd.f32 %v78, %v97
  %v100 = vadd.f32 %v79, %v97
  %v101 = vadd.f32 %v80, %v97
  %v102 = vadd.f32 %v81, %v97
  %v103 = vadd.f32 %v82, %v97
  %v104 = vadd.f32 %v83, %v97
  %v105 = vadd.f32 %v84, %v97
  %v106 = vadd.f32 %v85, %v97
  %v107 = vadd.f32 %v86, %v97
  %v108 = vadd.f32 %v87, %v97
  %v109 = vadd.f32 %v88, %v97
  %v110 = vadd.f32 %v89, %v97
  %v111 = vadd.f32 %v90, %v97
  %v112 = vadd.f32 %v91, %v97
  %v113 = vadd.f32 %v92, %v97
  %v114 = vmax.f32 %v98, 0.0
  %v115 = vmax.f32 %v99, 0.0
  %v116 = vmax.f32 %v100, 0.0
  %v117 = vmax.f32 %v101, 0.0
  %v118 = vmax.f32 %v102, 0.0
  %v119 = vmax.f32 %v103, 0.0
  %v120 = vmax.f32 %v104, 0.0
  %v121 = vmax.f32 %v105, 0.0
  %v122 = vmax.f32 %v106, 0.0
  %v123 = vmax.f32 %v107, 0.0
  %v124 = vmax.f32 %v108, 0.0
  %v125 = vmax.f32 %v109, 0.0
  %v126 = vmax.f32 %v110, 0.0
  %v127 = vmax.f32 %v111, 0.0
  %v128 = vmax.f32 %v112, 0.0
  %v129 = vmax.f32 %v113, 0.0
  %v130 = vpack.c.bf16 %v115, %v114
  %v131 = vpack.c.bf16 %v117, %v116
  %v132 = vpack.c.bf16 %v119, %v118
  %v133 = vpack.c.bf16 %v121, %v120
  %v134 = vpack.c.bf16 %v123, %v122
  %v135 = vpack.c.bf16 %v125, %v124
  %v136 = vpack.c.bf16 %v127, %v126
  %v137 = vpack.c.bf16 %v129, %v128
  %v138 = vld [vmem:[#allocation2] sm:$0xff]
  %v139 = vld [vmem:[#allocation2 + $0x8] sm:$0xff]
  %v140 = vld [vmem:[#allocation2 + $0x10] sm:$0xff]
  %v141 = vld [vmem:[#allocation2 + $0x18] sm:$0xff]
  %v142 = vld [vmem:[#allocation2 + $0x20] sm:$0xff]
  %v143 = vld [vmem:[#allocation2 + $0x28] sm:$0xff]
  %v144 = vld [vmem:[#allocation2 + $0x30] sm:$0xff]
  %v145 = vld [vmem:[#allocation2 + $0x38] sm:$0xff]
  %v146 = vld [vmem:[#allocation2 + $0x40] sm:$0xff]
  %v147 = vld [vmem:[#allocation2 + $0x48] sm:$0xff]
  %v148 = vld [vmem:[#allocation2 + $0x50] sm:$0xff]
  %v149 = vld [vmem:[#allocation2 + $0x58] sm:$0xff]
  %v150 = vld [vmem:[#allocation2 + $0x60] sm:$0xff]
  %v151 = vld [vmem:[#allocation2 + $0x68] sm:$0xff]
  %v152 = vld [vmem:[#allocation2 + $0x70] sm:$0xff]
  %v153 = vld [vmem:[#allocation2 + $0x78] sm:$0xff]
  %v154 = vld [vmem:[%s0] sm:$0xf]
  %v155 = vld [vmem:[%s0 + $0x4] sm:$0xf]
  %v156 = vld [vmem:[%s0 + $0x8] sm:$0xf]
  %v157 = vld [vmem:[%s0 + $0xc] sm:$0xf]
  %v158 = vld [vmem:[%s0 + $0x10] sm:$0xf]
  %v159 = vld [vmem:[%s0 + $0x14] sm:$0xf]
  %v160 = vld [vmem:[%s0 + $0x18] sm:$0xf]
  %v161 = vld [vmem:[%s0 + $0x1c] sm:$0xf]
  %v162 = vld [vmem:[%s0 + $0x20] sm:$0xf]
  %v163 = vld [vmem:[%s0 + $0x24] sm:$0xf]
  %v164 = vld [vmem:[%s0 + $0x28] sm:$0xf]
  %v165 = vld [vmem:[%s0 + $0x2c] sm:$0xf]
  %v166 = vld [vmem:[%s0 + $0x30] sm:$0xf]
  %v167 = vld [vmem:[%s0 + $0x34] sm:$0xf]
  %v168 = vld [vmem:[%s0 + $0x38] sm:$0xf]
  %v169 = vld [vmem:[%s0 + $0x3c] sm:$0xf]
  %v186 = vunpack.c.l.b16 %v154
  %v187 = vunpack.c.l.b16 %v155
  %v188 = vunpack.c.l.b16 %v156
  %v189 = vunpack.c.l.b16 %v157
  %v190 = vunpack.c.l.b16 %v158
  %v191 = vunpack.c.l.b16 %v159
  %v192 = vunpack.c.l.b16 %v160
  %v193 = vunpack.c.l.b16 %v161
  %v194 = vunpack.c.l.b16 %v162
  %v195 = vunpack.c.l.b16 %v163
  %v196 = vunpack.c.l.b16 %v164
  %v197 = vunpack.c.l.b16 %v165
  %v198 = vunpack.c.l.b16 %v166
  %v199 = vunpack.c.l.b16 %v167
  %v200 = vunpack.c.l.b16 %v168
  %v201 = vunpack.c.l.b16 %v169
  %v202 = vpack.c.b16 %v187, %v186
  %v203 = vpack.c.b16 %v189, %v188
  %v204 = vpack.c.b16 %v191, %v190
  %v205 = vpack.c.b16 %v193, %v192
  %v206 = vpack.c.b16 %v195, %v194
  %v207 = vpack.c.b16 %v197, %v196
  %v208 = vpack.c.b16 %v199, %v198
  %v209 = vpack.c.b16 %v201, %v200
  %218 = vmatprep.subr.bf16.mxu0 0
  %219 = vmatpush1.bf16.msra.mxu0 %v130
  %220 = vmatprep.subr.bf16.mxu0 0
  %221 = vmatpush1.bf16.msra.mxu0 %v131
  %222 = vmatprep.subr.bf16.mxu0 0
  %223 = vmatpush1.bf16.msra.mxu0 %v132
  %224 = vmatprep.subr.bf16.mxu0 0
  %225 = vmatpush1.bf16.msra.mxu0 %v133
  %226 = vmatprep.subr.bf16.mxu0 0
  %227 = vmatpush1.bf16.msra.mxu0 %v134
  %228 = vmatprep.subr.bf16.mxu0 0
  %229 = vmatpush1.bf16.msra.mxu0 %v135
  %230 = vmatprep.subr.bf16.mxu0 0
  %231 = vmatpush1.bf16.msra.mxu0 %v136
  %232 = vmatprep.subr.bf16.mxu0 0
  %233 = vmatpush1.bf16.msra.mxu0 %v137
  %234 = vmatprep.subr.bf16.mxu0 0
  %235 = vmatpush1.bf16.msra.mxu0 0
  %236 = vmatprep.subr.bf16.mxu0 0
  %237 = vmatpush1.bf16.msra.mxu0 0
  %238 = vmatprep.subr.bf16.mxu0 0
  %239 = vmatpush1.bf16.msra.mxu0 0
  %240 = vmatprep.subr.bf16.mxu0 0
  %241 = vmatpush1.bf16.msra.mxu0 0
  %242 = vmatprep.subr.bf16.mxu0 0
  %243 = vmatpush1.bf16.msra.mxu0 0
  %244 = vmatprep.subr.bf16.mxu0 0
  %245 = vmatpush1.bf16.msra.mxu0 0
  %246 = vmatprep.subr.bf16.mxu0 0
  %247 = vmatpush1.bf16.msra.mxu0 0
  %248 = vmatprep.subr.bf16.mxu0 0
  %249 = vmatpush1.bf16.msra.mxu0 0
  %250 = vmatprep.mubr.bf16.mxu0 0
  %251 = vmatmul.mubr.bf16.gmra.mrb[0].mxu0 %v202
  %v252 = vpop.f32.mrb[0].mxu0
  %v253 = vadd.f32 0.0, %v252
  %v254 = vpop.f32.mrb[0].mxu0
  %v255 = vpop.f32.mrb[0].mxu0
  %v256 = vadd.f32 0.0, %v255
  %v257 = vpop.f32.mrb[0].mxu0
  %258 = vmatprep.mubr.bf16.mxu0 0
  %259 = vmatmul.mubr.bf16.gmra.mrb[0].mxu0 %v203
  %v260 = vpop.f32.mrb[0].mxu0
  %v261 = vadd.f32 0.0, %v260
  %v262 = vpop.f32.mrb[0].mxu0
  %v263 = vpop.f32.mrb[0].mxu0
  %v264 = vadd.f32 0.0, %v263
  %v265 = vpop.f32.mrb[0].mxu0
  %266 = vmatprep.mubr.bf16.mxu0 0
  %267 = vmatmul.mubr.bf16.gmra.mrb[0].mxu0 %v204
  %v268 = vpop.f32.mrb[0].mxu0
  %v269 = vadd.f32 0.0, %v268
  %v270 = vpop.f32.mrb[0].mxu0
  %v271 = vpop.f32.mrb[0].mxu0
  %v272 = vadd.f32 0.0, %v271
  %v273 = vpop.f32.mrb[0].mxu0
  %274 = vmatprep.mubr.bf16.mxu0 0
  %275 = vmatmul.mubr.bf16.gmra.mrb[0].mxu0 %v205
  %v276 = vpop.f32.mrb[0].mxu0
  %v277 = vadd.f32 0.0, %v276
  %v278 = vpop.f32.mrb[0].mxu0
  %v279 = vpop.f32.mrb[0].mxu0
  %v280 = vadd.f32 0.0, %v279
  %v281 = vpop.f32.mrb[0].mxu0
  %282 = vmatprep.mubr.bf16.mxu0 0
  %283 = vmatmul.mubr.bf16.gmra.mrb[0].mxu0 %v206
  %v284 = vpop.f32.mrb[0].mxu0
  %v285 = vadd.f32 0.0, %v284
  %v286 = vpop.f32.mrb[0].mxu0
  %v287 = vpop.f32.mrb[0].mxu0
  %v288 = vadd.f32 0.0, %v287
  %v289 = vpop.f32.mrb[0].mxu0
  %290 = vmatprep.mubr.bf16.mxu0 0
  %291 = vmatmul.mubr.bf16.gmra.mrb[0].mxu0 %v207
  %v292 = vpop.f32.mrb[0].mxu0
  %v293 = vadd.f32 0.0, %v292
  %v294 = vpop.f32.mrb[0].mxu0
  %v295 = vpop.f32.mrb[0].mxu0
  %v296 = vadd.f32 0.0, %v295
  %v297 = vpop.f32.mrb[0].mxu0
  %298 = vmatprep.mubr.bf16.mxu0 0
  %299 = vmatmul.mubr.bf16.gmra.mrb[0].mxu0 %v208
  %v300 = vpop.f32.mrb[0].mxu0
  %v301 = vadd.f32 0.0, %v300
  %v302 = vpop.f32.mrb[0].mxu0
  %v303 = vpop.f32.mrb[0].mxu0
  %v304 = vadd.f32 0.0, %v303
  %v305 = vpop.f32.mrb[0].mxu0
  %306 = vmatprep.mubr.bf16.mxu0 0
  %307 = vmatmul.mubr.bf16.gmra.mrb[0].mxu0 %v209
  %v308 = vpop.f32.mrb[0].mxu0
  %v309 = vadd.f32 0.0, %v308
  %v310 = vpop.f32.mrb[0].mxu0
  %v311 = vpop.f32.mrb[0].mxu0
  %v312 = vadd.f32 0.0, %v311
  %v313 = vpop.f32.mrb[0].mxu0
  %314 = vdwg.mxu0
  %v315 = vadd.f32 %v138, %v253
  %v316 = vadd.f32 %v139, %v256
  %v317 = vadd.f32 %v140, %v261
  %v318 = vadd.f32 %v141, %v264
  %v319 = vadd.f32 %v142, %v269
  %v320 = vadd.f32 %v143, %v272
  %v321 = vadd.f32 %v144, %v277
  %v322 = vadd.f32 %v145, %v280
  %v323 = vadd.f32 %v146, %v285
  %v324 = vadd.f32 %v147, %v288
  %v325 = vadd.f32 %v148, %v293
  %v326 = vadd.f32 %v149, %v296
  %v327 = vadd.f32 %v150, %v301
  %v328 = vadd.f32 %v151, %v304
  %v329 = vadd.f32 %v152, %v309
  %v330 = vadd.f32 %v153, %v312
  %331 = vst [vmem:[#allocation2] sm:$0xff] %v315
  %332 = vst [vmem:[#allocation2 + $0x8] sm:$0xff] %v316
  %333 = vst [vmem:[#allocation2 + $0x10] sm:$0xff] %v317
  %334 = vst [vmem:[#allocation2 + $0x18] sm:$0xff] %v318
  %335 = vst [vmem:[#allocation2 + $0x20] sm:$0xff] %v319
  %336 = vst [vmem:[#allocation2 + $0x28] sm:$0xff] %v320
  %337 = vst [vmem:[#allocation2 + $0x30] sm:$0xff] %v321
  %338 = vst [vmem:[#allocation2 + $0x38] sm:$0xff] %v322
  %339 = vst [vmem:[#allocation2 + $0x40] sm:$0xff] %v323
  %340 = vst [vmem:[#allocation2 + $0x48] sm:$0xff] %v324
  %341 = vst [vmem:[#allocation2 + $0x50] sm:$0xff] %v325
  %342 = vst [vmem:[#allocation2 + $0x58] sm:$0xff] %v326
  %343 = vst [vmem:[#allocation2 + $0x60] sm:$0xff] %v327
  %344 = vst [vmem:[#allocation2 + $0x68] sm:$0xff] %v328
  %345 = vst [vmem:[#allocation2 + $0x70] sm:$0xff] %v329
  %346 = vst [vmem:[#allocation2 + $0x78] sm:$0xff] %v330
  // Predicated region
  $region22: #{residual_block.4} parent=0 // pred_check
    %p347 = pneg %p20
  $region23: #{residual_block.4} parent=0 // pred_check_branch
    %349 = sbr.rel (%p347) target = $region25
  $region24: #{residual_block.4} parent=0 // pred_region
    %v350 = vld [vmem:[#allocation2] sm:$0xff]
    %v351 = vld [vmem:[#allocation2 + $0x8] sm:$0xff]
    %v352 = vld [vmem:[#allocation2 + $0x10] sm:$0xff]
    %v353 = vld [vmem:[#allocation2 + $0x18] sm:$0xff]
    %v354 = vld [vmem:[#allocation2 + $0x20] sm:$0xff]
    %v355 = vld [vmem:[#allocation2 + $0x28] sm:$0xff]
    %v356 = vld [vmem:[#allocation2 + $0x30] sm:$0xff]
    %v357 = vld [vmem:[#allocation2 + $0x38] sm:$0xff]
    %v358 = vld [vmem:[#allocation2 + $0x40] sm:$0xff]
    %v359 = vld [vmem:[#allocation2 + $0x48] sm:$0xff]
    %v360 = vld [vmem:[#allocation2 + $0x50] sm:$0xff]
    %v361 = vld [vmem:[#allocation2 + $0x58] sm:$0xff]
    %v362 = vld [vmem:[#allocation2 + $0x60] sm:$0xff]
    %v363 = vld [vmem:[#allocation2 + $0x68] sm:$0xff]
    %v364 = vld [vmem:[#allocation2 + $0x70] sm:$0xff]
    %v365 = vld [vmem:[#allocation2 + $0x78] sm:$0xff]
    %v366 = vld [vmem:[%s3] sm:$0xff]
    %v367 = vld [vmem:[%s3 + $0x8] sm:$0xff]
    %v368 = vld [vmem:[%s3 + $0x10] sm:$0xff]
    %v369 = vld [vmem:[%s3 + $0x18] sm:$0xff]
    %v370 = vld [vmem:[%s3 + $0x20] sm:$0xff]
    %v371 = vld [vmem:[%s3 + $0x28] sm:$0xff]
    %v372 = vld [vmem:[%s3 + $0x30] sm:$0xff]
    %v373 = vld [vmem:[%s3 + $0x38] sm:$0xff]
    %v374 = vld [vmem:[%s3 + $0x40] sm:$0xff]
    %v375 = vld [vmem:[%s3 + $0x48] sm:$0xff]
    %v376 = vld [vmem:[%s3 + $0x50] sm:$0xff]
    %v377 = vld [vmem:[%s3 + $0x58] sm:$0xff]
    %v378 = vld [vmem:[%s3 + $0x60] sm:$0xff]
    %v379 = vld [vmem:[%s3 + $0x68] sm:$0xff]
    %v380 = vld [vmem:[%s3 + $0x70] sm:$0xff]
    %v381 = vld [vmem:[%s3 + $0x78] sm:$0xff]
    %v382 = vld [vmem:[%s2 + $0x2] sm:$0x1]
    %v383 = vlaneseq
    %v384 = vshrl.u32 %v383, 7
    %v385 = vsub.s32 0, %v384
    %v386 = vrot.slane %v382, %v385
    %387 = vmatprep.subr.mxu0 0.0
    %388 = vmatpush1.msra.mxu0 %v366
    %389 = vmatprep.subr.mxu0 0.0
    %390 = vmatpush1.msra.mxu0 %v367
    %391 = vmatprep.subr.mxu0 0.0
    %392 = vmatpush1.msra.mxu0 %v368
    %393 = vmatprep.subr.mxu0 0.0
    %394 = vmatpush1.msra.mxu0 %v369
    %395 = vmatprep.subr.mxu0 0.0
    %396 = vmatpush1.msra.mxu0 %v370
    %397 = vmatprep.subr.mxu0 0.0
    %398 = vmatpush1.msra.mxu0 %v371
    %399 = vmatprep.subr.mxu0 0.0
    %400 = vmatpush1.msra.mxu0 %v372
    %401 = vmatprep.subr.mxu0 0.0
    %402 = vmatpush1.msra.mxu0 %v373
    %403 = vmatprep.subr.mxu0 0.0
    %404 = vmatpush1.msra.mxu0 %v374
    %405 = vmatprep.subr.mxu0 0.0
    %406 = vmatpush1.msra.mxu0 %v375
    %407 = vmatprep.subr.mxu0 0.0
    %408 = vmatpush1.msra.mxu0 %v376
    %409 = vmatprep.subr.mxu0 0.0
    %410 = vmatpush1.msra.mxu0 %v377
    %411 = vmatprep.subr.mxu0 0.0
    %412 = vmatpush1.msra.mxu0 %v378
    %413 = vmatprep.subr.mxu0 0.0
    %414 = vmatpush1.msra.mxu0 %v379
    %415 = vmatprep.subr.mxu0 0.0
    %416 = vmatpush1.msra.mxu0 %v380
    %417 = vmatprep.subr.mxu0 0.0
    %418 = vmatpush1.msra.mxu0 %v381
    %419 = vmatprep.subr.mxu0 0.0
    %420 = vmatpush1.msra.mxu0 0.0
    %421 = vmatprep.subr.mxu0 0.0
    %422 = vmatpush1.msra.mxu0 0.0
    %423 = vmatprep.subr.mxu0 0.0
    %424 = vmatpush1.msra.mxu0 0.0
    %425 = vmatprep.subr.mxu0 0.0
    %426 = vmatpush1.msra.mxu0 0.0
    %427 = vmatprep.subr.mxu0 0.0
    %428 = vmatpush1.msra.mxu0 0.0
    %429 = vmatprep.subr.mxu0 0.0
    %430 = vmatpush1.msra.mxu0 0.0
    %431 = vmatprep.subr.mxu0 0.0
    %432 = vmatpush1.msra.mxu0 0.0
    %433 = vmatprep.subr.mxu0 0.0
    %434 = vmatpush1.msra.mxu0 0.0
    %435 = vmatprep.subr.mxu0 0.0
    %436 = vmatpush1.msra.mxu0 0.0
    %437 = vmatprep.subr.mxu0 0.0
    %438 = vmatpush1.msra.mxu0 0.0
    %439 = vmatprep.subr.mxu0 0.0
    %440 = vmatpush1.msra.mxu0 0.0
    %441 = vmatprep.subr.mxu0 0.0
    %442 = vmatpush1.msra.mxu0 0.0
    %443 = vmatprep.subr.mxu0 0.0
    %444 = vmatpush1.msra.mxu0 0.0
    %445 = vmatprep.subr.mxu0 0.0
    %446 = vmatpush1.msra.mxu0 0.0
    %447 = vmatprep.subr.mxu0 0.0
    %448 = vmatpush1.msra.mxu0 0.0
    %449 = vmatprep.subr.mxu0 0.0
    %450 = vmatpush1.msra.mxu0 0.0
    %451 = vmatprep.mubr.f32.mxu0 0.0
    %452 = vmatmul.mubr.f32.gmra.mrb[0].mxu0 %v350
    %v453 = vpop.f32.mrb[0].mxu0
    %v454 = vadd.f32 %v386, %v453
    %v455 = vpop.f32.mrb[0].mxu0
    %456 = vmatprep.mubr.f32.mxu0 0.0
    %457 = vmatmul.mubr.f32.gmra.mrb[0].mxu0 %v351
    %v458 = vpop.f32.mrb[0].mxu0
    %v459 = vadd.f32 %v386, %v458
    %v460 = vpop.f32.mrb[0].mxu0
    %461 = vmatprep.mubr.f32.mxu0 0.0
    %462 = vmatmul.mubr.f32.gmra.mrb[0].mxu0 %v352
    %v463 = vpop.f32.mrb[0].mxu0
    %v464 = vadd.f32 %v386, %v463
    %v465 = vpop.f32.mrb[0].mxu0
    %466 = vmatprep.mubr.f32.mxu0 0.0
    %467 = vmatmul.mubr.f32.gmra.mrb[0].mxu0 %v353
    %v468 = vpop.f32.mrb[0].mxu0
    %v469 = vadd.f32 %v386, %v468
    %v470 = vpop.f32.mrb[0].mxu0
    %471 = vmatprep.mubr.f32.mxu0 0.0
    %472 = vmatmul.mubr.f32.gmra.mrb[0].mxu0 %v354
    %v473 = vpop.f32.mrb[0].mxu0
    %v474 = vadd.f32 %v386, %v473
    %v475 = vpop.f32.mrb[0].mxu0
    %476 = vmatprep.mubr.f32.mxu0 0.0
    %477 = vmatmul.mubr.f32.gmra.mrb[0].mxu0 %v355
    %v478 = vpop.f32.mrb[0].mxu0
    %v479 = vadd.f32 %v386, %v478
    %v480 = vpop.f32.mrb[0].mxu0
    %481 = vmatprep.mubr.f32.mxu0 0.0
    %482 = vmatmul.mubr.f32.gmra.mrb[0].mxu0 %v356
    %v483 = vpop.f32.mrb[0].mxu0
    %v484 = vadd.f32 %v386, %v483
    %v485 = vpop.f32.mrb[0].mxu0
    %486 = vmatprep.mubr.f32.mxu0 0.0
    %487 = vmatmul.mubr.f32.gmra.mrb[0].mxu0 %v357
    %v488 = vpop.f32.mrb[0].mxu0
    %v489 = vadd.f32 %v386, %v488
    %v490 = vpop.f32.mrb[0].mxu0
    %491 = vmatprep.mubr.f32.mxu0 0.0
    %492 = vmatmul.mubr.f32.gmra.mrb[0].mxu0 %v358
    %v493 = vpop.f32.mrb[0].mxu0
    %v494 = vadd.f32 %v386, %v493
    %v495 = vpop.f32.mrb[0].mxu0
    %496 = vmatprep.mubr.f32.mxu0 0.0
    %497 = vmatmul.mubr.f32.gmra.mrb[0].mxu0 %v359
    %v498 = vpop.f32.mrb[0].mxu0
    %v499 = vadd.f32 %v386, %v498
    %v500 = vpop.f32.mrb[0].mxu0
    %501 = vmatprep.mubr.f32.mxu0 0.0
    %502 = vmatmul.mubr.f32.gmra.mrb[0].mxu0 %v360
    %v503 = vpop.f32.mrb[0].mxu0
    %v504 = vadd.f32 %v386, %v503
    %v505 = vpop.f32.mrb[0].mxu0
    %506 = vmatprep.mubr.f32.mxu0 0.0
    %507 = vmatmul.mubr.f32.gmra.mrb[0].mxu0 %v361
    %v508 = vpop.f32.mrb[0].mxu0
    %v509 = vadd.f32 %v386, %v508
    %v510 = vpop.f32.mrb[0].mxu0
    %511 = vmatprep.mubr.f32.mxu0 0.0
    %512 = vmatmul.mubr.f32.gmra.mrb[0].mxu0 %v362
    %v513 = vpop.f32.mrb[0].mxu0
    %v514 = vadd.f32 %v386, %v513
    %v515 = vpop.f32.mrb[0].mxu0
    %516 = vmatprep.mubr.f32.mxu0 0.0
    %517 = vmatmul.mubr.f32.gmra.mrb[0].mxu0 %v363
    %v518 = vpop.f32.mrb[0].mxu0
    %v519 = vadd.f32 %v386, %v518
    %v520 = vpop.f32.mrb[0].mxu0
    %521 = vmatprep.mubr.f32.mxu0 0.0
    %522 = vmatmul.mubr.f32.gmra.mrb[0].mxu0 %v364
    %v523 = vpop.f32.mrb[0].mxu0
    %v524 = vadd.f32 %v386, %v523
    %v525 = vpop.f32.mrb[0].mxu0
    %526 = vmatprep.mubr.f32.mxu0 0.0
    %527 = vmatmul.mubr.f32.gmra.mrb[0].mxu0 %v365
    %v528 = vpop.f32.mrb[0].mxu0
    %v529 = vadd.f32 %v386, %v528
    %v530 = vpop.f32.mrb[0].mxu0
    %531 = vdwg.mxu0
    %532 = vst [vmem:[%s4] sm:$0xff] %v454
    %533 = vst [vmem:[%s4 + $0x8] sm:$0xff] %v459
    %534 = vst [vmem:[%s4 + $0x10] sm:$0xff] %v464
    %535 = vst [vmem:[%s4 + $0x18] sm:$0xff] %v469
    %536 = vst [vmem:[%s4 + $0x20] sm:$0xff] %v474
    %537 = vst [vmem:[%s4 + $0x28] sm:$0xff] %v479
    %538 = vst [vmem:[%s4 + $0x30] sm:$0xff] %v484
    %539 = vst [vmem:[%s4 + $0x38] sm:$0xff] %v489
    %540 = vst [vmem:[%s4 + $0x40] sm:$0xff] %v494
    %541 = vst [vmem:[%s4 + $0x48] sm:$0xff] %v499
    %542 = vst [vmem:[%s4 + $0x50] sm:$0xff] %v504
    %543 = vst [vmem:[%s4 + $0x58] sm:$0xff] %v509
    %544 = vst [vmem:[%s4 + $0x60] sm:$0xff] %v514
    %545 = vst [vmem:[%s4 + $0x68] sm:$0xff] %v519
    %546 = vst [vmem:[%s4 + $0x70] sm:$0xff] %v524
    %547 = vst [vmem:[%s4 + $0x78] sm:$0xff] %v529
    %v548 = vadd.f32 %v454, %v459
    %v549 = vadd.f32 %v548, %v464
    %v550 = vadd.f32 %v549, %v469
    %v551 = vadd.f32 %v550, %v474
    %v552 = vadd.f32 %v551, %v479
    %v553 = vadd.f32 %v552, %v484
    %v554 = vadd.f32 %v553, %v489
    %v555 = vadd.f32 %v554, %v494
    %v556 = vadd.f32 %v555, %v499
    %v557 = vadd.f32 %v556, %v504
    %v558 = vadd.f32 %v557, %v509
    %v559 = vadd.f32 %v558, %v514
    %v560 = vadd.f32 %v559, %v519
    %v561 = vadd.f32 %v560, %v524
    %v562 = vadd.f32 %v561, %v529
    %v563 = vrot.slane %v562, 4
    %v564 = vadd.f32 %v562, %v563
    %v565 = vrot.slane %v564, 2
    %v566 = vadd.f32 %v564, %v565
    %v567 = vrot.slane %v566, 1
    %v568 = vadd.f32 %v566, %v567
    %v569 = vmul.f32 %v454, %v454
    %v570 = vmul.f32 %v459, %v459
    %v571 = vmul.f32 %v464, %v464
    %v572 = vmul.f32 %v469, %v469
    %v573 = vmul.f32 %v474, %v474
    %v574 = vmul.f32 %v479, %v479
    %v575 = vmul.f32 %v484, %v484
    %v576 = vmul.f32 %v489, %v489
    %v577 = vmul.f32 %v494, %v494
    %v578 = vmul.f32 %v499, %v499
    %v579 = vmul.f32 %v504, %v504
    %v580 = vmul.f32 %v509, %v509
    %v581 = vmul.f32 %v514, %v514
    %v582 = vmul.f32 %v519, %v519
    %v583 = vmul.f32 %v524, %v524
    %v584 = vmul.f32 %v529, %v529
    %v585 = vadd.f32 %v569, %v570
    %v586 = vadd.f32 %v585, %v571
    %v587 = vadd.f32 %v586, %v572
    %v588 = vadd.f32 %v587, %v573
    %v589 = vadd.f32 %v588, %v574
    %v590 = vadd.f32 %v589, %v575
    %v591 = vadd.f32 %v590, %v576
    %v592 = vadd.f32 %v591, %v577
    %v593 = vadd.f32 %v592, %v578
    %v594 = vadd.f32 %v593, %v579
    %v595 = vadd.f32 %v594, %v580
    %v596 = vadd.f32 %v595, %v581
    %v597 = vadd.f32 %v596, %v582
    %v598 = vadd.f32 %v597, %v583
    %v599 = vadd.f32 %v598, %v584
    %v600 = vrot.slane %v599, 4
    %v601 = vadd.f32 %v599, %v600
    %v602 = vrot.slane %v601, 2
    %v603 = vadd.f32 %v601, %v602
    %v604 = vrot.slane %v603, 1
    %v605 = vadd.f32 %v603, %v604
    %vm606 = vcmask 1040384
    %v607 = vsel %vm606, %v568, %v605
    %vm608 = vcmask 1041408
    %v609 = vsel %vm608, %v607, 0.0
    %610 = vst [vmem:[%s5] sm:$0xff] %v609
  $region25: #{residual_block.4} parent=0 // pred_fallthru
    _
  // Predicated region
  $region26: #{residual_block.4} parent=0 // pred_check
    _
  $region27: #{residual_block.4} parent=0 // pred_check_branch
    %612 = sbr.rel (0) target = $region29
  $region28: #{residual_block.4} parent=0 // pred_region
    _
  $region29: #{residual_block.4} parent=0 // pred_fallthru
    _
  // Predicated region
  $region30: #{residual_block.4} parent=0 // pred_check
    _
  $region31: #{residual_block.4} parent=0 // pred_check_branch
    %614 = sbr.rel (0) target = $region33
  $region32: #{residual_block.4} parent=0 // pred_region
    _
  $region33: #{residual_block.4} parent=0 // pred_fallthru
    _
  // Predicated region
  $region34: #{residual_block.4} parent=0 // pred_check
    _
  $region35: #{residual_block.4} parent=0 // pred_check_branch
    %616 = sbr.rel (0) target = $region37
  $region36: #{residual_block.4} parent=0 // pred_region
    _
  $region37: #{residual_block.4} parent=0 // pred_fallthru
    _
  // Predicated region
  $region38: #{residual_block.4} parent=0 // pred_check
    _
  $region39: #{residual_block.4} parent=0 // pred_check_branch
    %618 = sbr.rel (0) target = $region41
  $region40: #{residual_block.4} parent=0 // pred_region
    _
  $region41: #{residual_block.4} parent=0 // pred_fallthru
    _

// kernel: residual_block.5
$region0: #{residual_block.5}
  #allocation0 [shape = 'u32[]', space=smem, size = 0x4, offset = 0x4, fixed_abs, tag = 'smem constant byte address 0x4 - core index']
  #allocation1 [shape = 'u32[144,128]{1,0:T(1,128)}', space=vmem, size = 0x12000, scoped, tag = 'internal scratch']
  %s0 = inlined_call_operand.vmem [shape: f32[128,128], index: 0, kind: input, shape index: {}]
  %s1 = inlined_call_operand.vmem [shape: f32[128,128], index: 1, kind: input, shape index: {}]
  %s2 = inlined_call_operand.vmem [shape: f32[8,128], index: 2, kind: input, shape index: {}]
  %s3 = inlined_call_operand.vmem [shape: f32[128,128], index: 3, kind: input, shape index: {}]
  %s4 = inlined_call_operand.vmem [shape: f32[128,128], index: 4, kind: output, shape index: {}]
  %s5 = sld [smem:[#allocation0]]
  $region26: #{residual_block.5} parent=0
    _
  %s7 = ssub.s32 1, %s5
  %s8 = scalar_select 0, %s7, %s5
  // Predicated region
  $region2: #{residual_block.5} parent=0 // pred_check
    _
  $region3: #{residual_block.5} parent=0 // pred_check_branch
    %10 = sbr.rel (0) target = $region5
  $region4: #{residual_block.5} parent=0 // pred_region
    _
  $region5: #{residual_block.5} parent=0 // pred_fallthru
    _
  // Predicated region
  $region6: #{residual_block.5} parent=0 // pred_check
    _
  $region7: #{residual_block.5} parent=0 // pred_check_branch
    %12 = sbr.rel (0) target = $region9
  $region8: #{residual_block.5} parent=0 // pred_region
    _
  $region9: #{residual_block.5} parent=0 // pred_fallthru
    _
  // Predicated region
  $region10: #{residual_block.5} parent=0 // pred_check
    _
  $region11: #{residual_block.5} parent=0 // pred_check_branch
    %14 = sbr.rel (0) target = $region13
  $region12: #{residual_block.5} parent=0 // pred_region
    _
  $region13: #{residual_block.5} parent=0 // pred_fallthru
    _
  // Predicated region
  $region14: #{residual_block.5} parent=0 // pred_check
    _
  $region15: #{residual_block.5} parent=0 // pred_check_branch
    %16 = sbr.rel (0) target = $region17
  $region16: #{residual_block.5} parent=0 // pred_region
    _
  $region17: #{residual_block.5} parent=0 // pred_fallthru
    _
  %v17 = vld [vmem:[%s1] sm:$0xff]
  %v18 = vld [vmem:[%s1 + $0x8] sm:$0xff]
  %v19 = vld [vmem:[%s1 + $0x10] sm:$0xff]
  %v20 = vld [vmem:[%s1 + $0x18] sm:$0xff]
  %v21 = vld [vmem:[%s1 + $0x20] sm:$0xff]
  %v22 = vld [vmem:[%s1 + $0x28] sm:$0xff]
  %v23 = vld [vmem:[%s1 + $0x30] sm:$0xff]
  %v24 = vld [vmem:[%s1 + $0x38] sm:$0xff]
  %v25 = vld [vmem:[%s1 + $0x40] sm:$0xff]
  %v26 = vld [vmem:[%s1 + $0x48] sm:$0xff]
  %v27 = vld [vmem:[%s1 + $0x50] sm:$0xff]
  %v28 = vld [vmem:[%s1 + $0x58] sm:$0xff]
  %v29 = vld [vmem:[%s1 + $0x60] sm:$0xff]
  %v30 = vld [vmem:[%s1 + $0x68] sm:$0xff]
  %v31 = vld [vmem:[%s1 + $0x70] sm:$0xff]
  %v32 = vld [vmem:[%s1 + $0x78] sm:$0xff]
  %v33 = vld [vmem:[%s3] sm:$0xff]
  %v34 = vld [vmem:[%s3 + $0x8] sm:$0xff]
  %v35 = vld [vmem:[%s3 + $0x10] sm:$0xff]
  %v36 = vld [vmem:[%s3 + $0x18] sm:$0xff]
  %v37 = vld [vmem:[%s3 + $0x20] sm:$0xff]
  %v38 = vld [vmem:[%s3 + $0x28] sm:$0xff]
  %v39 = vld [vmem:[%s3 + $0x30] sm:$0xff]
  %v40 = vld [vmem:[%s3 + $0x38] sm:$0xff]
  %v41 = vld [vmem:[%s3 + $0x40] sm:$0xff]
  %v42 = vld [vmem:[%s3 + $0x48] sm:$0xff]
  %v43 = vld [vmem:[%s3 + $0x50] sm:$0xff]
  %v44 = vld [vmem:[%s3 + $0x58] sm:$0xff]
  %v45 = vld [vmem:[%s3 + $0x60] sm:$0xff]
  %v46 = vld [vmem:[%s3 + $0x68] sm:$0xff]
  %v47 = vld [vmem:[%s3 + $0x70] sm:$0xff]
  %v48 = vld [vmem:[%s3 + $0x78] sm:$0xff]
  %49 = vmatprep.subr.mxu0 0.0
  %50 = vmatpush1.msra.mxu0 %v33
  %51 = vmatprep.subr.mxu0 0.0
  %52 = vmatpush1.msra.mxu0 %v34
  %53 = vmatprep.subr.mxu0 0.0
  %54 = vmatpush1.msra.mxu0 %v35
  %55 = vmatprep.subr.mxu0 0.0
  %56 = vmatpush1.msra.mxu0 %v36
  %57 = vmatprep.subr.mxu0 0.0
  %58 = vmatpush1.msra.mxu0 %v37
  %59 = vmatprep.subr.mxu0 0.0
  %60 = vmatpush1.msra.mxu0 %v38
  %61 = vmatprep.subr.mxu0 0.0
  %62 = vmatpush1.msra.mxu0 %v39
  %63 = vmatprep.subr.mxu0 0.0
  %64 = vmatpush1.msra.mxu0 %v40
  %65 = vmatprep.subr.mxu0 0.0
  %66 = vmatpush1.msra.mxu0 %v41
  %67 = vmatprep.subr.mxu0 0.0
  %68 = vmatpush1.msra.mxu0 %v42
  %69 = vmatprep.subr.mxu0 0.0
  %70 = vmatpush1.msra.mxu0 %v43
  %71 = vmatprep.subr.mxu0 0.0
  %72 = vmatpush1.msra.mxu0 %v44
  %73 = vmatprep.subr.mxu0 0.0
  %74 = vmatpush1.msra.mxu0 %v45
  %75 = vmatprep.subr.mxu0 0.0
  %76 = vmatpush1.msra.mxu0 %v46
  %77 = vmatprep.subr.mxu0 0.0
  %78 = vmatpush1.msra.mxu0 %v47
  %79 = vmatprep.subr.mxu0 0.0
  %80 = vmatpush1.msra.mxu0 %v48
  %81 = vmatprep.subr.mxu0 0.0
  %82 = vmatpush1.msra.mxu0 0.0
  %83 = vmatprep.subr.mxu0 0.0
  %84 = vmatpush1.msra.mxu0 0.0
  %85 = vmatprep.subr.mxu0 0.0
  %86 = vmatpush1.msra.mxu0 0.0
  %87 = vmatprep.subr.mxu0 0.0
  %88 = vmatpush1.msra.mxu0 0.0
  %89 = vmatprep.subr.mxu0 0.0
  %90 = vmatpush1.msra.mxu0 0.0
  %91 = vmatprep.subr.mxu0 0.0
  %92 = vmatpush1.msra.mxu0 0.0
  %93 = vmatprep.subr.mxu0 0.0
  %94 = vmatpush1.msra.mxu0 0.0
  %95 = vmatprep.subr.mxu0 0.0
  %96 = vmatpush1.msra.mxu0 0.0
  %97 = vmatprep.subr.mxu0 0.0
  %98 = vmatpush1.msra.mxu0 0.0
  %99 = vmatprep.subr.mxu0 0.0
  %100 = vmatpush1.msra.mxu0 0.0
  %101 = vmatprep.subr.mxu0 0.0
  %102 = vmatpush1.msra.mxu0 0.0
  %103 = vmatprep.subr.mxu0 0.0
  %104 = vmatpush1.msra.mxu0 0.0
  %105 = vmatprep.subr.mxu0 0.0
  %106 = vmatpush1.msra.mxu0 0.0
  %107 = vmatprep.subr.mxu0 0.0
  %108 = vmatpush1.msra.mxu0 0.0
  %109 = vmatprep.subr.mxu0 0.0
  %110 = vmatpush1.msra.mxu0 0.0
  %111 = vmatprep.subr.mxu0 0.0
  %112 = vmatpush1.msra.mxu0 0.0
  %113 = vmatprep.mubr.f32.mxu0 0.0
  %114 = vmatmul.mubr.f32.gmra.mrb[0].mxu0 %v17
  %v115 = vpop.f32.mrb[0].mxu0
  %v116 = vadd.f32 0.0, %v115
  %v117 = vpop.f32.mrb[0].mxu0
  %118 = vmatprep.mubr.f32.mxu0 0.0
  %119 = vmatmul.mubr.f32.gmra.mrb[0].mxu0 %v18
  %v120 = vpop.f32.mrb[0].mxu0
  %v121 = vadd.f32 0.0, %v120
  %v122 = vpop.f32.mrb[0].mxu0
  %123 = vmatprep.mubr.f32.mxu0 0.0
  %124 = vmatmul.mubr.f32.gmra.mrb[0].mxu0 %v19
  %v125 = vpop.f32.mrb[0].mxu0
  %v126 = vadd.f32 0.0, %v125
  %v127 = vpop.f32.mrb[0].mxu0
  %128 = vmatprep.mubr.f32.mxu0 0.0
  %129 = vmatmul.mubr.f32.gmra.mrb[0].mxu0 %v20
  %v130 = vpop.f32.mrb[0].mxu0
  %v131 = vadd.f32 0.0, %v130
  %v132 = vpop.f32.mrb[0].mxu0
  %133 = vmatprep.mubr.f32.mxu0 0.0
  %134 = vmatmul.mubr.f32.gmra.mrb[0].mxu0 %v21
  %v135 = vpop.f32.mrb[0].mxu0
  %v136 = vadd.f32 0.0, %v135
  %v137 = vpop.f32.mrb[0].mxu0
  %138 = vmatprep.mubr.f32.mxu0 0.0
  %139 = vmatmul.mubr.f32.gmra.mrb[0].mxu0 %v22
  %v140 = vpop.f32.mrb[0].mxu0
  %v141 = vadd.f32 0.0, %v140
  %v142 = vpop.f32.mrb[0].mxu0
  %143 = vmatprep.mubr.f32.mxu0 0.0
  %144 = vmatmul.mubr.f32.gmra.mrb[0].mxu0 %v23
  %v145 = vpop.f32.mrb[0].mxu0
  %v146 = vadd.f32 0.0, %v145
  %v147 = vpop.f32.mrb[0].mxu0
  %148 = vmatprep.mubr.f32.mxu0 0.0
  %149 = vmatmul.mubr.f32.gmra.mrb[0].mxu0 %v24
  %v150 = vpop.f32.mrb[0].mxu0
  %v151 = vadd.f32 0.0, %v150
  %v152 = vpop.f32.mrb[0].mxu0
  %153 = vmatprep.mubr.f32.mxu0 0.0
  %154 = vmatmul.mubr.f32.gmra.mrb[0].mxu0 %v25
  %v155 = vpop.f32.mrb[0].mxu0
  %v156 = vadd.f32 0.0, %v155
  %v157 = vpop.f32.mrb[0].mxu0
  %158 = vmatprep.mubr.f32.mxu0 0.0
  %159 = vmatmul.mubr.f32.gmra.mrb[0].mxu0 %v26
  %v160 = vpop.f32.mrb[0].mxu0
  %v161 = vadd.f32 0.0, %v160
  %v162 = vpop.f32.mrb[0].mxu0
  %163 = vmatprep.mubr.f32.mxu0 0.0
  %164 = vmatmul.mubr.f32.gmra.mrb[0].mxu0 %v27
  %v165 = vpop.f32.mrb[0].mxu0
  %v166 = vadd.f32 0.0, %v165
  %v167 = vpop.f32.mrb[0].mxu0
  %168 = vmatprep.mubr.f32.mxu0 0.0
  %169 = vmatmul.mubr.f32.gmra.mrb[0].mxu0 %v28
  %v170 = vpop.f32.mrb[0].mxu0
  %v171 = vadd.f32 0.0, %v170
  %v172 = vpop.f32.mrb[0].mxu0
  %173 = vmatprep.mubr.f32.mxu0 0.0
  %174 = vmatmul.mubr.f32.gmra.mrb[0].mxu0 %v29
  %v175 = vpop.f32.mrb[0].mxu0
  %v176 = vadd.f32 0.0, %v175
  %v177 = vpop.f32.mrb[0].mxu0
  %178 = vmatprep.mubr.f32.mxu0 0.0
  %179 = vmatmul.mubr.f32.gmra.mrb[0].mxu0 %v30
  %v180 = vpop.f32.mrb[0].mxu0
  %v181 = vadd.f32 0.0, %v180
  %v182 = vpop.f32.mrb[0].mxu0
  %183 = vmatprep.mubr.f32.mxu0 0.0
  %184 = vmatmul.mubr.f32.gmra.mrb[0].mxu0 %v31
  %v185 = vpop.f32.mrb[0].mxu0
  %v186 = vadd.f32 0.0, %v185
  %v187 = vpop.f32.mrb[0].mxu0
  %188 = vmatprep.mubr.f32.mxu0 0.0
  %189 = vmatmul.mubr.f32.gmra.mrb[0].mxu0 %v32
  %v190 = vpop.f32.mrb[0].mxu0
  %v191 = vadd.f32 0.0, %v190
  %v192 = vpop.f32.mrb[0].mxu0
  %193 = vdwg.mxu0
  %v194 = vld [vmem:[%s2] sm:$0x1]
  %v195 = vld [vmem:[%s0] sm:$0xff]
  %v196 = vld [vmem:[%s0 + $0x8] sm:$0xff]
  %v197 = vld [vmem:[%s0 + $0x10] sm:$0xff]
  %v198 = vld [vmem:[%s0 + $0x18] sm:$0xff]
  %v199 = vld [vmem:[%s0 + $0x20] sm:$0xff]
  %v200 = vld [vmem:[%s0 + $0x28] sm:$0xff]
  %v201 = vld [vmem:[%s0 + $0x30] sm:$0xff]
  %v202 = vld [vmem:[%s0 + $0x38] sm:$0xff]
  %v203 = vld [vmem:[%s0 + $0x40] sm:$0xff]
  %v204 = vld [vmem:[%s0 + $0x48] sm:$0xff]
  %v205 = vld [vmem:[%s0 + $0x50] sm:$0xff]
  %v206 = vld [vmem:[%s0 + $0x58] sm:$0xff]
  %v207 = vld [vmem:[%s0 + $0x60] sm:$0xff]
  %v208 = vld [vmem:[%s0 + $0x68] sm:$0xff]
  %v209 = vld [vmem:[%s0 + $0x70] sm:$0xff]
  %v210 = vld [vmem:[%s0 + $0x78] sm:$0xff]
  %v211 = vlaneseq
  %v212 = vshrl.u32 %v211, 7
  %v213 = vsub.s32 0, %v212
  %v214 = vrot.slane %v194, %v213
  %v215 = vmul.f32 %v214, %v195
  %v216 = vmul.f32 %v214, %v196
  %v217 = vmul.f32 %v214, %v197
  %v218 = vmul.f32 %v214, %v198
  %v219 = vmul.f32 %v214, %v199
  %v220 = vmul.f32 %v214, %v200
  %v221 = vmul.f32 %v214, %v201
  %v222 = vmul.f32 %v214, %v202
  %v223 = vmul.f32 %v214, %v203
  %v224 = vmul.f32 %v214, %v204
  %v225 = vmul.f32 %v214, %v205
  %v226 = vmul.f32 %v214, %v206
  %v227 = vmul.f32 %v214, %v207
  %v228 = vmul.f32 %v214, %v208
  %v229 = vmul.f32 %v214, %v209
  %v230 = vmul.f32 %v214, %v210
  %v231 = vld [vmem:[%s2 + $0x1] sm:$0x1]
  %v232 = vlaneseq
  %v233 = vshrl.u32 %v232, 7
  %v234 = vsub.s32 0, %v233
  %v235 = vrot.slane %v231, %v234
  %v236 = vadd.f32 %v215, %v235
  %v237 = vadd.f32 %v216, %v235
  %v238 = vadd.f32 %v217, %v235
  %v239 = vadd.f32 %v218, %v235
  %v240 = vadd.f32 %v219, %v235
  %v241 = vadd.f32 %v220, %v235
  %v242 = vadd.f32 %v221, %v235
  %v243 = vadd.f32 %v222, %v235
  %v244 = vadd.f32 %v223, %v235
  %v245 = vadd.f32 %v224, %v235
  %v246 = vadd.f32 %v225, %v235
  %v247 = vadd.f32 %v226, %v235
  %v248 = vadd.f32 %v227, %v235
  %v249 = vadd.f32 %v228, %v235
  %v250 = vadd.f32 %v229, %v235
  %v251 = vadd.f32 %v230, %v235
  %v252 = vadd.f32 %v236, %v116
  %v253 = vadd.f32 %v237, %v121
  %v254 = vadd.f32 %v238, %v126
  %v255 = vadd.f32 %v239, %v131
  %v256 = vadd.f32 %v240, %v136
  %v257 = vadd.f32 %v241, %v141
  %v258 = vadd.f32 %v242, %v146
  %v259 = vadd.f32 %v243, %v151
  %v260 = vadd.f32 %v244, %v156
  %v261 = vadd.f32 %v245, %v161
  %v262 = vadd.f32 %v246, %v166
  %v263 = vadd.f32 %v247, %v171
  %v264 = vadd.f32 %v248, %v176
  %v265 = vadd.f32 %v249, %v181
  %v266 = vadd.f32 %v250, %v186
  %v267 = vadd.f32 %v251, %v191
  %v268 = vld [vmem:[%s2 + $0x2] sm:$0x1]
  %v269 = vlaneseq
  %v270 = vshrl.u32 %v269, 7
  %v271 = vsub.s32 0, %v270
  %v272 = vrot.slane %v268, %v271
  %v273 = vadd.f32 %v252, %v272
  %v274 = vadd.f32 %v253, %v272
  %v275 = vadd.f32 %v254, %v272
  %v276 = vadd.f32 %v255, %v272
  %v277 = vadd.f32 %v256, %v272
  %v278 = vadd.f32 %v257, %v272
  %v279 = vadd.f32 %v258, %v272
  %v280 = vadd.f32 %v259, %v272
  %v281 = vadd.f32 %v260, %v272
  %v282 = vadd.f32 %v261, %v272
  %v283 = vadd.f32 %v262, %v272
  %v284 = vadd.f32 %v263, %v272
  %v285 = vadd.f32 %v264, %v272
  %v286 = vadd.f32 %v265, %v272
  %v287 = vadd.f32 %v266, %v272
  %v288 = vadd.f32 %v267, %v272
  %v289 = vmax.f32 %v273, 0.0
  %v290 = vmax.f32 %v274, 0.0
  %v291 = vmax.f32 %v275, 0.0
  %v292 = vmax.f32 %v276, 0.0
  %v293 = vmax.f32 %v277, 0.0
  %v294 = vmax.f32 %v278, 0.0
  %v295 = vmax.f32 %v279, 0.0
  %v296 = vmax.f32 %v280, 0.0
  %v297 = vmax.f32 %v281, 0.0
  %v298 = vmax.f32 %v282, 0.0
  %v299 = vmax.f32 %v283, 0.0
  %v300 = vmax.f32 %v284, 0.0
  %v301 = vmax.f32 %v285, 0.0
  %v302 = vmax.f32 %v286, 0.0
  %v303 = vmax.f32 %v287, 0.0
  %v304 = vmax.f32 %v288, 0.0
  %305 = vst [vmem:[%s4] sm:$0xff] %v289
  %306 = vst [vmem:[%s4 + $0x8] sm:$0xff] %v290
  %307 = vst [vmem:[%s4 + $0x10] sm:$0xff] %v291
  %308 = vst [vmem:[%s4 + $0x18] sm:$0xff] %v292
  %309 = vst [vmem:[%s4 + $0x20] sm:$0xff] %v293
  %310 = vst [vmem:[%s4 + $0x28] sm:$0xff] %v294
  %311 = vst [vmem:[%s4 + $0x30] sm:$0xff] %v295
  %312 = vst [vmem:[%s4 + $0x38] sm:$0xff] %v296
  %313 = vst [vmem:[%s4 + $0x40] sm:$0xff] %v297
  %314 = vst [vmem:[%s4 + $0x48] sm:$0xff] %v298
  %315 = vst [vmem:[%s4 + $0x50] sm:$0xff] %v299
  %316 = vst [vmem:[%s4 + $0x58] sm:$0xff] %v300
  %317 = vst [vmem:[%s4 + $0x60] sm:$0xff] %v301
  %318 = vst [vmem:[%s4 + $0x68] sm:$0xff] %v302
  %319 = vst [vmem:[%s4 + $0x70] sm:$0xff] %v303
  %320 = vst [vmem:[%s4 + $0x78] sm:$0xff] %v304
  // Predicated region
  $region18: #{residual_block.5} parent=0 // pred_check
    _
  $region19: #{residual_block.5} parent=0 // pred_check_branch
    %322 = sbr.rel (0) target = $region21
  $region20: #{residual_block.5} parent=0 // pred_region
    _
  $region21: #{residual_block.5} parent=0 // pred_fallthru
    _
  // Predicated region
  $region22: #{residual_block.5} parent=0 // pred_check
    _
  $region23: #{residual_block.5} parent=0 // pred_check_branch
    %324 = sbr.rel (0) target = $region25
  $region24: #{residual_block.5} parent=0 // pred_region
    _
  $region25: #{residual_block.5} parent=0 // pred_fallthru
    _

</llo_original>
